<compile_context>
chip_gen: v6e
topology: v6e:2x2x1
jax: 0.10.0
libtpu: 0.0.40
codegen_flags: <defaults>
</compile_context>

<pallas_src>
import jax
import jax.numpy as jnp
from jax.experimental import pallas as pl
from jax.experimental.pallas import tpu as pltpu


# tap index t = kh*3 + kw  (dh = kh-1, dw = kw-1)
TAPS = tuple((dh, dw) for dh in (-1, 0, 1) for dw in (-1, 0, 1))


# ------------------------------ fused kernel ------------------------------- #

def _make_fused_kernel(H, W, C1, C2, NB):
    HW = H * W
    L = NB * HW
    # pixel p of tap t reads flat index p + dh*W + dw  ->  roll by -(dh*W+dw)
    SHIFTS = tuple(((-(dh * W + dw)) % L) for dh, dw in TAPS)

    def kernel(b3_ref, mask_ref, x_ref, eff_ref,
               w1_ref, b1_ref, w2_ref, b2_ref, w3_ref,
               o_ref, stk1_ref, stk2_ref, stk3_ref):
        x = x_ref[0]                       # (1, L)  input image(s), lane-flat
        mask = mask_ref[...]               # (9, L)  {0,1} tap validity

        # ---- conv1 (1 -> C1): stack 9 rolled+masked input taps, one dot ----
        for t in range(9):
            s = SHIFTS[t]
            xs = x if s == 0 else pltpu.roll(x, s, 1)
            stk1_ref[t:t + 1, :] = xs * mask[t:t + 1, :]
        a1 = jnp.dot(w1_ref[...], stk1_ref[...],
                     preferred_element_type=jnp.float32)            # (C1, L)
        a1 = jnp.maximum(a1 + b1_ref[...], 0.0) * eff_ref[0]        # ReLU * laser effect

        # ---- conv2 (C1 -> C2): stacked taps (9*C1, L), single K=144 dot ----
        for t in range(9):
            s = SHIFTS[t]
            a1s = a1 if s == 0 else pltpu.roll(a1, s, 1)
            stk2_ref[t * C1:(t + 1) * C1, :] = a1s * mask[t:t + 1, :]
        a2 = jnp.dot(w2_ref[...], stk2_ref[...],
                     preferred_element_type=jnp.float32)            # (C2, L)
        a2 = jnp.maximum(a2 + b2_ref[...], 0.0)

        # ---- deconv (C2 -> 1) as flipped conv: (9*C2, L), single K=288 dot -
        for t in range(9):
            s = SHIFTS[t]
            a2s = a2 if s == 0 else pltpu.roll(a2, s, 1)
            stk3_ref[t * C2:(t + 1) * C2, :] = a2s * mask[t:t + 1, :]
        y = jnp.dot(w3_ref[...], stk3_ref[...],
                    preferred_element_type=jnp.float32)             # (1, L)

        o_ref[0] = x - jnp.maximum(y + b3_ref[0], 0.0)              # residual

    return kernel


# ------------------------- one-time parameter prep ------------------------- #

def _pick_nb(B, max_nb=8):
    """Images folded onto the lane axis per grid step; keep >=2 grid steps
    when possible so both v7x TensorCores get work (no-op on v5e/v6e)."""
    best = 1
    upper = min(max_nb, max(B // 2, 1))
    for nb in range(1, upper + 1):
        if B % nb == 0:
            best = nb
    return best


def prepare_convnet(P, B, H, W, max_nb=8):
    """Hoisted out of the hot path: folded weights, biases, tap masks."""
    assert H == W, "module reshapes x to (B, 1, H, H)"
    C1, C2 = P["w1"].shape[0], P["w2"].shape[0]
    HW = H * W
    NB = _pick_nb(B, max_nb)
    f32 = jnp.float32

    # Tap-folded weights; contraction index = t*Cin + cin with t = kh*3 + kw.
    w1_f = P["w1"].astype(f32).reshape(C1, 9)                                   # cin = 1
    w2_f = jnp.transpose(P["w2"].astype(f32), (0, 2, 3, 1)).reshape(C2, 9 * C1)
    # ConvTranspose2d(stride=1, pad=1) == conv with flipped, io-transposed kernel.
    w3_eq = jnp.transpose(jnp.flip(P["w3"].astype(f32), (2, 3)), (1, 0, 2, 3))  # (1, C2, 3, 3)
    w3_f = jnp.transpose(w3_eq, (0, 2, 3, 1)).reshape(1, 9 * C2)

    b1 = P["b1"].astype(f32).reshape(C1, 1)
    b2 = P["b2"].astype(f32).reshape(C2, 1)
    b3 = P["b3"].astype(f32).reshape(1)

    # 9 tap-validity masks (3x3, padding=1), tiled over the NB folded images.
    idx = jnp.arange(HW, dtype=jnp.int32)
    hh, ww = idx // W, idx % W
    rows = [((hh + dh >= 0) & (hh + dh < H) & (ww + dw >= 0) & (ww + dw < W))
            for dh, dw in TAPS]
    mask = jnp.tile(jnp.stack(rows).astype(f32), (1, NB))                       # (9, NB*HW)

    return dict(w1=w1_f, b1=b1, w2=w2_f, b2=b2, w3=w3_f, b3=b3,
                laser_W=P["laser_W"].astype(f32), mask=mask)


# ------------------------------- JAX wrapper -------------------------------- #

@jax.jit
def convnet_forward(x, laser_parameter, prep):
    B, H, W = x.shape
    HW = H * W
    L = prep["mask"].shape[1]
    NB = L // HW                       # images folded per grid step
    G = B // NB                        # grid steps
    C1 = prep["b1"].shape[0]
    C2 = prep["b2"].shape[0]

    x_flat = x.astype(jnp.float32).reshape(G, 1, L)

    # laser effect = laser_parameter @ laser_W, broadcast per pixel on lanes
    effect = (laser_parameter.reshape(-1, 5).astype(jnp.float32)
              @ prep["laser_W"]).reshape(B)
    eff_lanes = jnp.broadcast_to(effect[:, None], (B, HW)).reshape(G, 1, L)

    kernel = _make_fused_kernel(H, W, C1, C2, NB)
    resident = lambda shape: pl.BlockSpec(shape, lambda g: (0, 0))
    per_step = pl.BlockSpec((1, 1, L), lambda g: (g, 0, 0))

    out = pl.pallas_call(
        kernel,
        out_shape=jax.ShapeDtypeStruct((G, 1, L), jnp.float32),
        grid=(G,),
        in_specs=[
            pl.BlockSpec(memory_space=pltpu.MemorySpace.SMEM),   # b3 scalar
            resident((9, L)),                                    # tap masks
            per_step,                                            # x
            per_step,                                            # effect lanes
            resident((C1, 9)),                                   # w1 folded
            resident((C1, 1)),                                   # b1
            resident((C2, 9 * C1)),                              # w2 folded
            resident((C2, 1)),                                   # b2
            resident((1, 9 * C2)),                               # w3 folded (deconv)
        ],
        out_specs=per_step,
        scratch_shapes=[
            pltpu.VMEM((9, L), jnp.float32),                     # conv1 stacked taps
            pltpu.VMEM((9 * C1, L), jnp.float32),                # conv2 stacked taps
            pltpu.VMEM((9 * C2, L), jnp.float32),                # deconv stacked taps
        ],
        compiler_params=pltpu.CompilerParams(
            dimension_semantics=("parallel",),                   # split grid across TCs
            vmem_limit_bytes=32 * 1024 * 1024,
        ),
    )(prep["b3"], prep["mask"], x_flat, eff_lanes,
      prep["w1"], prep["b1"], prep["w2"], prep["b2"], prep["w3"])

    return out.reshape(B, 1, H, W)


# ------------------------- pure-JAX reference check ------------------------ #

def _reference_forward(x, laser_parameter, P):
    B, H = x.shape[0], x.shape[1]
    x4 = x.reshape(B, -1, H, H).astype(jnp.float32)
    effect = (laser_parameter.reshape(-1, 5).astype(jnp.float32)
              @ P["laser_W"].astype(jnp.float32))

    def conv(inp, w, b):
        y = jax.lax.conv_general_dilated(
            inp, w, window_strides=(1, 1), padding=((1, 1), (1, 1)),
            dimension_numbers=("NCHW", "OIHW", "NCHW"),
            precision=jax.lax.Precision.HIGHEST)
        return y + b.reshape(1, -1, 1, 1)

    out = jnp.maximum(conv(x4, P["w1"], P["b1"]), 0.0)
    out = out * effect.reshape(B, 1, 1, 1)
    out = jnp.maximum(conv(out, P["w2"], P["b2"]), 0.0)
    # ConvTranspose2d(stride=1, pad=1) == conv with flipped, io-transposed kernel
    w3_eq = jnp.transpose(jnp.flip(P["w3"], (2, 3)), (1, 0, 2, 3))
    out = jnp.maximum(conv(out, w3_eq, P["b3"]), 0.0)
    return x4 - out


# ----------------------------------- main ----------------------------------- #

if __name__ == "__main__":
    key = jax.random.PRNGKey(0)
    ks = jax.random.split(key, 9)
    P = {
        "w1": 0.3 * jax.random.normal(ks[0], (16, 1, 3, 3), jnp.float32),   # Conv2d(1, 16, 3)
        "b1": 0.1 * jax.random.normal(ks[1], (16,), jnp.float32),
        "w2": 0.1 * jax.random.normal(ks[2], (32, 16, 3, 3), jnp.float32),  # Conv2d(16, 32, 3)
        "b2": 0.1 * jax.random.normal(ks[3], (32,), jnp.float32),
        "w3": 0.1 * jax.random.normal(ks[4], (32, 1, 3, 3), jnp.float32),   # ConvTranspose2d(32, 1, 3)
        "b3": 0.1 * jax.random.normal(ks[5], (1,), jnp.float32),
        # NOTE: the original module initializes laser_W to zeros; a nonzero
        # deterministic init is used so the effect-scaling path is exercised.
        "laser_W": 0.1 * jax.random.normal(ks[6], (5, 1), jnp.float32),
    }
    B, H = 2, 16
    x = jax.random.normal(ks[7], (B, H, H), jnp.float32)
    laser_parameter = jax.random.normal(ks[8], (B, 5), jnp.float32)

    prep = prepare_convnet(P, B, H, H)          # one-time, hoisted out of hot path
    out = jax.block_until_ready(convnet_forward(x, laser_parameter, prep))
    ref = jax.block_until_ready(_reference_forward(x, laser_parameter, P))

    assert out.shape == (B, 1, H, H), out.shape
    err = float(jnp.max(jnp.abs(out - ref)))
    assert jnp.allclose(out, ref, atol=1e-3, rtol=1e-3), err
    print("KERNEL_OK")
</pallas_src>

<mosaic_0001>
module attributes {stable_mosaic.version = 11 : i64} {
  func.func @kernel(%arg0: i32, %arg1: memref<1xf32, #tpu.memory_space<smem>>, %arg2: memref<9x256xf32, #tpu.memory_space<vmem>>, %arg3: memref<1x1x256xf32, #tpu.memory_space<vmem>>, %arg4: memref<1x1x256xf32, #tpu.memory_space<vmem>>, %arg5: memref<16x9xf32, #tpu.memory_space<vmem>>, %arg6: memref<16x1xf32, #tpu.memory_space<vmem>>, %arg7: memref<32x144xf32, #tpu.memory_space<vmem>>, %arg8: memref<32x1xf32, #tpu.memory_space<vmem>>, %arg9: memref<1x288xf32, #tpu.memory_space<vmem>>, %arg10: memref<1x1x256xf32, #tpu.memory_space<vmem>>, %arg11: memref<9x256xf32, #tpu.memory_space<vmem>>, %arg12: memref<144x256xf32, #tpu.memory_space<vmem>>, %arg13: memref<288x256xf32, #tpu.memory_space<vmem>>) attributes {dimension_semantics = [#tpu.dimension_semantics<parallel>], iteration_bounds = array<i64: 2>, scalar_prefetch = 0 : i64, scratch_operands = 3 : i64, tpu.core_type = #tpu.core_type<tc>, window_params = [{transform_indices = @transform_0, window_bounds = array<i64: 1>}, {pipeline_mode = #tpu.pipeline_mode<synchronous>, transform_indices = @transform_1, window_bounds = array<i64: 9, 256>}, {transform_indices = @transform_2, window_bounds = array<i64: 1, 1, 256>}, {transform_indices = @transform_3, window_bounds = array<i64: 1, 1, 256>}, {pipeline_mode = #tpu.pipeline_mode<synchronous>, transform_indices = @transform_4, window_bounds = array<i64: 16, 9>}, {pipeline_mode = #tpu.pipeline_mode<synchronous>, transform_indices = @transform_5, window_bounds = array<i64: 16, 1>}, {pipeline_mode = #tpu.pipeline_mode<synchronous>, transform_indices = @transform_6, window_bounds = array<i64: 32, 144>}, {pipeline_mode = #tpu.pipeline_mode<synchronous>, transform_indices = @transform_7, window_bounds = array<i64: 32, 1>}, {pipeline_mode = #tpu.pipeline_mode<synchronous>, transform_indices = @transform_8, window_bounds = array<i64: 1, 288>}, {transform_indices = @transform_9, window_bounds = array<i64: 1, 1, 256>}]} {
    %c0 = arith.constant 0 : index
    %c0_0 = arith.constant 0 : index
    %c0_1 = arith.constant 0 : index
    %0 = vector.load %arg3[%c0, %c0_0, %c0_1] : memref<1x1x256xf32, #tpu.memory_space<vmem>>, vector<1x1x256xf32>
    %1 = vector.shape_cast %0 : vector<1x1x256xf32> to vector<1x256xf32>
    %c0_2 = arith.constant 0 : index
    %c0_3 = arith.constant 0 : index
    %2 = vector.load %arg2[%c0_2, %c0_3] : memref<9x256xf32, #tpu.memory_space<vmem>>, vector<9x256xf32>
    %c17_i32 = arith.constant 17 : i32
    %3 = tpu.dynamic_rotate %1 by %c17_i32 dim 1 : vector<1x256xf32>, i32 -> vector<1x256xf32>
    %4 = vector.extract_strided_slice %2 {offsets = [0, 0], sizes = [1, 256], strides = [1, 1]} : vector<9x256xf32> to vector<1x256xf32>
    %5 = arith.mulf %3, %4 : vector<1x256xf32>
    %c0_4 = arith.constant 0 : index
    %c0_5 = arith.constant 0 : index
    %6 = vector.load %arg11[%c0_4, %c0_5] : memref<9x256xf32, #tpu.memory_space<vmem>>, vector<1x256xf32>
    tpu.vector_store %arg11[%c0_4, %c0_5], %5 {strides = array<i32>} : memref<9x256xf32, #tpu.memory_space<vmem>>, vector<1x256xf32>,
    %c16_i32 = arith.constant 16 : i32
    %7 = tpu.dynamic_rotate %1 by %c16_i32 dim 1 : vector<1x256xf32>, i32 -> vector<1x256xf32>
    %8 = vector.extract_strided_slice %2 {offsets = [1, 0], sizes = [1, 256], strides = [1, 1]} : vector<9x256xf32> to vector<1x256xf32>
    %9 = arith.mulf %7, %8 : vector<1x256xf32>
    %c1 = arith.constant 1 : index
    %c0_6 = arith.constant 0 : index
    %10 = vector.load %arg11[%c1, %c0_6] : memref<9x256xf32, #tpu.memory_space<vmem>>, vector<1x256xf32>
    tpu.vector_store %arg11[%c1, %c0_6], %9 {strides = array<i32>} : memref<9x256xf32, #tpu.memory_space<vmem>>, vector<1x256xf32>,
    %c15_i32 = arith.constant 15 : i32
    %11 = tpu.dynamic_rotate %1 by %c15_i32 dim 1 : vector<1x256xf32>, i32 -> vector<1x256xf32>
    %12 = vector.extract_strided_slice %2 {offsets = [2, 0], sizes = [1, 256], strides = [1, 1]} : vector<9x256xf32> to vector<1x256xf32>
    %13 = arith.mulf %11, %12 : vector<1x256xf32>
    %c2 = arith.constant 2 : index
    %c0_7 = arith.constant 0 : index
    %14 = vector.load %arg11[%c2, %c0_7] : memref<9x256xf32, #tpu.memory_space<vmem>>, vector<1x256xf32>
    tpu.vector_store %arg11[%c2, %c0_7], %13 {strides = array<i32>} : memref<9x256xf32, #tpu.memory_space<vmem>>, vector<1x256xf32>,
    %c1_i32 = arith.constant 1 : i32
    %15 = tpu.dynamic_rotate %1 by %c1_i32 dim 1 : vector<1x256xf32>, i32 -> vector<1x256xf32>
    %16 = vector.extract_strided_slice %2 {offsets = [3, 0], sizes = [1, 256], strides = [1, 1]} : vector<9x256xf32> to vector<1x256xf32>
    %17 = arith.mulf %15, %16 : vector<1x256xf32>
    %c3 = arith.constant 3 : index
    %c0_8 = arith.constant 0 : index
    %18 = vector.load %arg11[%c3, %c0_8] : memref<9x256xf32, #tpu.memory_space<vmem>>, vector<1x256xf32>
    tpu.vector_store %arg11[%c3, %c0_8], %17 {strides = array<i32>} : memref<9x256xf32, #tpu.memory_space<vmem>>, vector<1x256xf32>,
    %19 = vector.extract_strided_slice %2 {offsets = [4, 0], sizes = [1, 256], strides = [1, 1]} : vector<9x256xf32> to vector<1x256xf32>
    %20 = arith.mulf %1, %19 : vector<1x256xf32>
    %c4 = arith.constant 4 : index
    %c0_9 = arith.constant 0 : index
    %21 = vector.load %arg11[%c4, %c0_9] : memref<9x256xf32, #tpu.memory_space<vmem>>, vector<1x256xf32>
    tpu.vector_store %arg11[%c4, %c0_9], %20 {strides = array<i32>} : memref<9x256xf32, #tpu.memory_space<vmem>>, vector<1x256xf32>,
    %c255_i32 = arith.constant 255 : i32
    %22 = tpu.dynamic_rotate %1 by %c255_i32 dim 1 : vector<1x256xf32>, i32 -> vector<1x256xf32>
    %23 = vector.extract_strided_slice %2 {offsets = [5, 0], sizes = [1, 256], strides = [1, 1]} : vector<9x256xf32> to vector<1x256xf32>
    %24 = arith.mulf %22, %23 : vector<1x256xf32>
    %c5 = arith.constant 5 : index
    %c0_10 = arith.constant 0 : index
    %25 = vector.load %arg11[%c5, %c0_10] : memref<9x256xf32, #tpu.memory_space<vmem>>, vector<1x256xf32>
    tpu.vector_store %arg11[%c5, %c0_10], %24 {strides = array<i32>} : memref<9x256xf32, #tpu.memory_space<vmem>>, vector<1x256xf32>,
    %c241_i32 = arith.constant 241 : i32
    %26 = tpu.dynamic_rotate %1 by %c241_i32 dim 1 : vector<1x256xf32>, i32 -> vector<1x256xf32>
    %27 = vector.extract_strided_slice %2 {offsets = [6, 0], sizes = [1, 256], strides = [1, 1]} : vector<9x256xf32> to vector<1x256xf32>
    %28 = arith.mulf %26, %27 : vector<1x256xf32>
    %c6 = arith.constant 6 : index
    %c0_11 = arith.constant 0 : index
    %29 = vector.load %arg11[%c6, %c0_11] : memref<9x256xf32, #tpu.memory_space<vmem>>, vector<1x256xf32>
    tpu.vector_store %arg11[%c6, %c0_11], %28 {strides = array<i32>} : memref<9x256xf32, #tpu.memory_space<vmem>>, vector<1x256xf32>,
    %c240_i32 = arith.constant 240 : i32
    %30 = tpu.dynamic_rotate %1 by %c240_i32 dim 1 : vector<1x256xf32>, i32 -> vector<1x256xf32>
    %31 = vector.extract_strided_slice %2 {offsets = [7, 0], sizes = [1, 256], strides = [1, 1]} : vector<9x256xf32> to vector<1x256xf32>
    %32 = arith.mulf %30, %31 : vector<1x256xf32>
    %c7 = arith.constant 7 : index
    %c0_12 = arith.constant 0 : index
    %33 = vector.load %arg11[%c7, %c0_12] : memref<9x256xf32, #tpu.memory_space<vmem>>, vector<1x256xf32>
    tpu.vector_store %arg11[%c7, %c0_12], %32 {strides = array<i32>} : memref<9x256xf32, #tpu.memory_space<vmem>>, vector<1x256xf32>,
    %c239_i32 = arith.constant 239 : i32
    %34 = tpu.dynamic_rotate %1 by %c239_i32 dim 1 : vector<1x256xf32>, i32 -> vector<1x256xf32>
    %35 = vector.extract_strided_slice %2 {offsets = [8, 0], sizes = [1, 256], strides = [1, 1]} : vector<9x256xf32> to vector<1x256xf32>
    %36 = arith.mulf %34, %35 : vector<1x256xf32>
    %c8 = arith.constant 8 : index
    %c0_13 = arith.constant 0 : index
    %37 = vector.load %arg11[%c8, %c0_13] : memref<9x256xf32, #tpu.memory_space<vmem>>, vector<1x256xf32>
    tpu.vector_store %arg11[%c8, %c0_13], %36 {strides = array<i32>} : memref<9x256xf32, #tpu.memory_space<vmem>>, vector<1x256xf32>,
    %c0_14 = arith.constant 0 : index
    %c0_15 = arith.constant 0 : index
    %38 = vector.load %arg5[%c0_14, %c0_15] : memref<16x9xf32, #tpu.memory_space<vmem>>, vector<16x9xf32>
    %c0_16 = arith.constant 0 : index
    %c0_17 = arith.constant 0 : index
    %39 = vector.load %arg11[%c0_16, %c0_17] : memref<9x256xf32, #tpu.memory_space<vmem>>, vector<9x256xf32>
    %cst = arith.constant dense<0.000000e+00> : vector<16x256xf32>
    %40 = tpu.matmul %38, %39, %cst {dimension_numbers = #tpu.dot_dimension_numbers<[1], [0], [0], [1], [0, 0, 1, 1], [], []>} : vector<16x9xf32>, vector<9x256xf32>, vector<16x256xf32> -> vector<16x256xf32>
    %c0_18 = arith.constant 0 : index
    %c0_19 = arith.constant 0 : index
    %41 = vector.load %arg6[%c0_18, %c0_19] : memref<16x1xf32, #tpu.memory_space<vmem>>, vector<16x1xf32>
    %42 = vector.broadcast %41 : vector<16x1xf32> to vector<16x256xf32>
    %43 = arith.addf %40, %42 : vector<16x256xf32>
    %cst_20 = arith.constant 0.000000e+00 : f32
    %44 = vector.broadcast %cst_20 : f32 to vector<16x256xf32>
    %45 = arith.maximumf %43, %44 : vector<16x256xf32>
    %c0_21 = arith.constant 0 : index
    %c0_22 = arith.constant 0 : index
    %c0_23 = arith.constant 0 : index
    %46 = vector.load %arg4[%c0_21, %c0_22, %c0_23] : memref<1x1x256xf32, #tpu.memory_space<vmem>>, vector<1x1x256xf32>
    %47 = vector.shape_cast %46 : vector<1x1x256xf32> to vector<1x256xf32>
    %48 = vector.broadcast %47 : vector<1x256xf32> to vector<16x256xf32>
    %49 = arith.mulf %45, %48 : vector<16x256xf32>
    %c17_i32_24 = arith.constant 17 : i32
    %50 = tpu.dynamic_rotate %49 by %c17_i32_24 dim 1 : vector<16x256xf32>, i32 -> vector<16x256xf32>
    %51 = vector.extract_strided_slice %2 {offsets = [0, 0], sizes = [1, 256], strides = [1, 1]} : vector<9x256xf32> to vector<1x256xf32>
    %52 = vector.broadcast %51 : vector<1x256xf32> to vector<16x256xf32>
    %53 = arith.mulf %50, %52 : vector<16x256xf32>
    %c0_25 = arith.constant 0 : index
    %c0_26 = arith.constant 0 : index
    %54 = vector.load %arg12[%c0_25, %c0_26] : memref<144x256xf32, #tpu.memory_space<vmem>>, vector<16x256xf32>
    tpu.vector_store %arg12[%c0_25, %c0_26], %53 {strides = array<i32>} : memref<144x256xf32, #tpu.memory_space<vmem>>, vector<16x256xf32>,
    %c16_i32_27 = arith.constant 16 : i32
    %55 = tpu.dynamic_rotate %49 by %c16_i32_27 dim 1 : vector<16x256xf32>, i32 -> vector<16x256xf32>
    %56 = vector.extract_strided_slice %2 {offsets = [1, 0], sizes = [1, 256], strides = [1, 1]} : vector<9x256xf32> to vector<1x256xf32>
    %57 = vector.broadcast %56 : vector<1x256xf32> to vector<16x256xf32>
    %58 = arith.mulf %55, %57 : vector<16x256xf32>
    %c16 = arith.constant 16 : index
    %c0_28 = arith.constant 0 : index
    %59 = vector.load %arg12[%c16, %c0_28] : memref<144x256xf32, #tpu.memory_space<vmem>>, vector<16x256xf32>
    tpu.vector_store %arg12[%c16, %c0_28], %58 {strides = array<i32>} : memref<144x256xf32, #tpu.memory_space<vmem>>, vector<16x256xf32>,
    %c15_i32_29 = arith.constant 15 : i32
    %60 = tpu.dynamic_rotate %49 by %c15_i32_29 dim 1 : vector<16x256xf32>, i32 -> vector<16x256xf32>
    %61 = vector.extract_strided_slice %2 {offsets = [2, 0], sizes = [1, 256], strides = [1, 1]} : vector<9x256xf32> to vector<1x256xf32>
    %62 = vector.broadcast %61 : vector<1x256xf32> to vector<16x256xf32>
    %63 = arith.mulf %60, %62 : vector<16x256xf32>
    %c32 = arith.constant 32 : index
    %c0_30 = arith.constant 0 : index
    %64 = vector.load %arg12[%c32, %c0_30] : memref<144x256xf32, #tpu.memory_space<vmem>>, vector<16x256xf32>
    tpu.vector_store %arg12[%c32, %c0_30], %63 {strides = array<i32>} : memref<144x256xf32, #tpu.memory_space<vmem>>, vector<16x256xf32>,
    %c1_i32_31 = arith.constant 1 : i32
    %65 = tpu.dynamic_rotate %49 by %c1_i32_31 dim 1 : vector<16x256xf32>, i32 -> vector<16x256xf32>
    %66 = vector.extract_strided_slice %2 {offsets = [3, 0], sizes = [1, 256], strides = [1, 1]} : vector<9x256xf32> to vector<1x256xf32>
    %67 = vector.broadcast %66 : vector<1x256xf32> to vector<16x256xf32>
    %68 = arith.mulf %65, %67 : vector<16x256xf32>
    %c48 = arith.constant 48 : index
    %c0_32 = arith.constant 0 : index
    %69 = vector.load %arg12[%c48, %c0_32] : memref<144x256xf32, #tpu.memory_space<vmem>>, vector<16x256xf32>
    tpu.vector_store %arg12[%c48, %c0_32], %68 {strides = array<i32>} : memref<144x256xf32, #tpu.memory_space<vmem>>, vector<16x256xf32>,
    %70 = vector.extract_strided_slice %2 {offsets = [4, 0], sizes = [1, 256], strides = [1, 1]} : vector<9x256xf32> to vector<1x256xf32>
    %71 = vector.broadcast %70 : vector<1x256xf32> to vector<16x256xf32>
    %72 = arith.mulf %49, %71 : vector<16x256xf32>
    %c64 = arith.constant 64 : index
    %c0_33 = arith.constant 0 : index
    %73 = vector.load %arg12[%c64, %c0_33] : memref<144x256xf32, #tpu.memory_space<vmem>>, vector<16x256xf32>
    tpu.vector_store %arg12[%c64, %c0_33], %72 {strides = array<i32>} : memref<144x256xf32, #tpu.memory_space<vmem>>, vector<16x256xf32>,
    %c255_i32_34 = arith.constant 255 : i32
    %74 = tpu.dynamic_rotate %49 by %c255_i32_34 dim 1 : vector<16x256xf32>, i32 -> vector<16x256xf32>
    %75 = vector.extract_strided_slice %2 {offsets = [5, 0], sizes = [1, 256], strides = [1, 1]} : vector<9x256xf32> to vector<1x256xf32>
    %76 = vector.broadcast %75 : vector<1x256xf32> to vector<16x256xf32>
    %77 = arith.mulf %74, %76 : vector<16x256xf32>
    %c80 = arith.constant 80 : index
    %c0_35 = arith.constant 0 : index
    %78 = vector.load %arg12[%c80, %c0_35] : memref<144x256xf32, #tpu.memory_space<vmem>>, vector<16x256xf32>
    tpu.vector_store %arg12[%c80, %c0_35], %77 {strides = array<i32>} : memref<144x256xf32, #tpu.memory_space<vmem>>, vector<16x256xf32>,
    %c241_i32_36 = arith.constant 241 : i32
    %79 = tpu.dynamic_rotate %49 by %c241_i32_36 dim 1 : vector<16x256xf32>, i32 -> vector<16x256xf32>
    %80 = vector.extract_strided_slice %2 {offsets = [6, 0], sizes = [1, 256], strides = [1, 1]} : vector<9x256xf32> to vector<1x256xf32>
    %81 = vector.broadcast %80 : vector<1x256xf32> to vector<16x256xf32>
    %82 = arith.mulf %79, %81 : vector<16x256xf32>
    %c96 = arith.constant 96 : index
    %c0_37 = arith.constant 0 : index
    %83 = vector.load %arg12[%c96, %c0_37] : memref<144x256xf32, #tpu.memory_space<vmem>>, vector<16x256xf32>
    tpu.vector_store %arg12[%c96, %c0_37], %82 {strides = array<i32>} : memref<144x256xf32, #tpu.memory_space<vmem>>, vector<16x256xf32>,
    %c240_i32_38 = arith.constant 240 : i32
    %84 = tpu.dynamic_rotate %49 by %c240_i32_38 dim 1 : vector<16x256xf32>, i32 -> vector<16x256xf32>
    %85 = vector.extract_strided_slice %2 {offsets = [7, 0], sizes = [1, 256], strides = [1, 1]} : vector<9x256xf32> to vector<1x256xf32>
    %86 = vector.broadcast %85 : vector<1x256xf32> to vector<16x256xf32>
    %87 = arith.mulf %84, %86 : vector<16x256xf32>
    %c112 = arith.constant 112 : index
    %c0_39 = arith.constant 0 : index
    %88 = vector.load %arg12[%c112, %c0_39] : memref<144x256xf32, #tpu.memory_space<vmem>>, vector<16x256xf32>
    tpu.vector_store %arg12[%c112, %c0_39], %87 {strides = array<i32>} : memref<144x256xf32, #tpu.memory_space<vmem>>, vector<16x256xf32>,
    %c239_i32_40 = arith.constant 239 : i32
    %89 = tpu.dynamic_rotate %49 by %c239_i32_40 dim 1 : vector<16x256xf32>, i32 -> vector<16x256xf32>
    %90 = vector.extract_strided_slice %2 {offsets = [8, 0], sizes = [1, 256], strides = [1, 1]} : vector<9x256xf32> to vector<1x256xf32>
    %91 = vector.broadcast %90 : vector<1x256xf32> to vector<16x256xf32>
    %92 = arith.mulf %89, %91 : vector<16x256xf32>
    %c128 = arith.constant 128 : index
    %c0_41 = arith.constant 0 : index
    %93 = vector.load %arg12[%c128, %c0_41] : memref<144x256xf32, #tpu.memory_space<vmem>>, vector<16x256xf32>
    tpu.vector_store %arg12[%c128, %c0_41], %92 {strides = array<i32>} : memref<144x256xf32, #tpu.memory_space<vmem>>, vector<16x256xf32>,
    %c0_42 = arith.constant 0 : index
    %c0_43 = arith.constant 0 : index
    %94 = vector.load %arg7[%c0_42, %c0_43] : memref<32x144xf32, #tpu.memory_space<vmem>>, vector<32x144xf32>
    %c0_44 = arith.constant 0 : index
    %c0_45 = arith.constant 0 : index
    %95 = vector.load %arg12[%c0_44, %c0_45] : memref<144x256xf32, #tpu.memory_space<vmem>>, vector<144x256xf32>
    %cst_46 = arith.constant dense<0.000000e+00> : vector<32x256xf32>
    %96 = tpu.matmul %94, %95, %cst_46 {dimension_numbers = #tpu.dot_dimension_numbers<[1], [0], [0], [1], [0, 0, 1, 1], [], []>} : vector<32x144xf32>, vector<144x256xf32>, vector<32x256xf32> -> vector<32x256xf32>
    %c0_47 = arith.constant 0 : index
    %c0_48 = arith.constant 0 : index
    %97 = vector.load %arg8[%c0_47, %c0_48] : memref<32x1xf32, #tpu.memory_space<vmem>>, vector<32x1xf32>
    %98 = vector.broadcast %97 : vector<32x1xf32> to vector<32x256xf32>
    %99 = arith.addf %96, %98 : vector<32x256xf32>
    %cst_49 = arith.constant 0.000000e+00 : f32
    %100 = vector.broadcast %cst_49 : f32 to vector<32x256xf32>
    %101 = arith.maximumf %99, %100 : vector<32x256xf32>
    %c17_i32_50 = arith.constant 17 : i32
    %102 = tpu.dynamic_rotate %101 by %c17_i32_50 dim 1 : vector<32x256xf32>, i32 -> vector<32x256xf32>
    %103 = vector.extract_strided_slice %2 {offsets = [0, 0], sizes = [1, 256], strides = [1, 1]} : vector<9x256xf32> to vector<1x256xf32>
    %104 = vector.broadcast %103 : vector<1x256xf32> to vector<32x256xf32>
    %105 = arith.mulf %102, %104 : vector<32x256xf32>
    %c0_51 = arith.constant 0 : index
    %c0_52 = arith.constant 0 : index
    %106 = vector.load %arg13[%c0_51, %c0_52] : memref<288x256xf32, #tpu.memory_space<vmem>>, vector<32x256xf32>
    tpu.vector_store %arg13[%c0_51, %c0_52], %105 {strides = array<i32>} : memref<288x256xf32, #tpu.memory_space<vmem>>, vector<32x256xf32>,
    %c16_i32_53 = arith.constant 16 : i32
    %107 = tpu.dynamic_rotate %101 by %c16_i32_53 dim 1 : vector<32x256xf32>, i32 -> vector<32x256xf32>
    %108 = vector.extract_strided_slice %2 {offsets = [1, 0], sizes = [1, 256], strides = [1, 1]} : vector<9x256xf32> to vector<1x256xf32>
    %109 = vector.broadcast %108 : vector<1x256xf32> to vector<32x256xf32>
    %110 = arith.mulf %107, %109 : vector<32x256xf32>
    %c32_54 = arith.constant 32 : index
    %c0_55 = arith.constant 0 : index
    %111 = vector.load %arg13[%c32_54, %c0_55] : memref<288x256xf32, #tpu.memory_space<vmem>>, vector<32x256xf32>
    tpu.vector_store %arg13[%c32_54, %c0_55], %110 {strides = array<i32>} : memref<288x256xf32, #tpu.memory_space<vmem>>, vector<32x256xf32>,
    %c15_i32_56 = arith.constant 15 : i32
    %112 = tpu.dynamic_rotate %101 by %c15_i32_56 dim 1 : vector<32x256xf32>, i32 -> vector<32x256xf32>
    %113 = vector.extract_strided_slice %2 {offsets = [2, 0], sizes = [1, 256], strides = [1, 1]} : vector<9x256xf32> to vector<1x256xf32>
    %114 = vector.broadcast %113 : vector<1x256xf32> to vector<32x256xf32>
    %115 = arith.mulf %112, %114 : vector<32x256xf32>
    %c64_57 = arith.constant 64 : index
    %c0_58 = arith.constant 0 : index
    %116 = vector.load %arg13[%c64_57, %c0_58] : memref<288x256xf32, #tpu.memory_space<vmem>>, vector<32x256xf32>
    tpu.vector_store %arg13[%c64_57, %c0_58], %115 {strides = array<i32>} : memref<288x256xf32, #tpu.memory_space<vmem>>, vector<32x256xf32>,
    %c1_i32_59 = arith.constant 1 : i32
    %117 = tpu.dynamic_rotate %101 by %c1_i32_59 dim 1 : vector<32x256xf32>, i32 -> vector<32x256xf32>
    %118 = vector.extract_strided_slice %2 {offsets = [3, 0], sizes = [1, 256], strides = [1, 1]} : vector<9x256xf32> to vector<1x256xf32>
    %119 = vector.broadcast %118 : vector<1x256xf32> to vector<32x256xf32>
    %120 = arith.mulf %117, %119 : vector<32x256xf32>
    %c96_60 = arith.constant 96 : index
    %c0_61 = arith.constant 0 : index
    %121 = vector.load %arg13[%c96_60, %c0_61] : memref<288x256xf32, #tpu.memory_space<vmem>>, vector<32x256xf32>
    tpu.vector_store %arg13[%c96_60, %c0_61], %120 {strides = array<i32>} : memref<288x256xf32, #tpu.memory_space<vmem>>, vector<32x256xf32>,
    %122 = vector.extract_strided_slice %2 {offsets = [4, 0], sizes = [1, 256], strides = [1, 1]} : vector<9x256xf32> to vector<1x256xf32>
    %123 = vector.broadcast %122 : vector<1x256xf32> to vector<32x256xf32>
    %124 = arith.mulf %101, %123 : vector<32x256xf32>
    %c128_62 = arith.constant 128 : index
    %c0_63 = arith.constant 0 : index
    %125 = vector.load %arg13[%c128_62, %c0_63] : memref<288x256xf32, #tpu.memory_space<vmem>>, vector<32x256xf32>
    tpu.vector_store %arg13[%c128_62, %c0_63], %124 {strides = array<i32>} : memref<288x256xf32, #tpu.memory_space<vmem>>, vector<32x256xf32>,
    %c255_i32_64 = arith.constant 255 : i32
    %126 = tpu.dynamic_rotate %101 by %c255_i32_64 dim 1 : vector<32x256xf32>, i32 -> vector<32x256xf32>
    %127 = vector.extract_strided_slice %2 {offsets = [5, 0], sizes = [1, 256], strides = [1, 1]} : vector<9x256xf32> to vector<1x256xf32>
    %128 = vector.broadcast %127 : vector<1x256xf32> to vector<32x256xf32>
    %129 = arith.mulf %126, %128 : vector<32x256xf32>
    %c160 = arith.constant 160 : index
    %c0_65 = arith.constant 0 : index
    %130 = vector.load %arg13[%c160, %c0_65] : memref<288x256xf32, #tpu.memory_space<vmem>>, vector<32x256xf32>
    tpu.vector_store %arg13[%c160, %c0_65], %129 {strides = array<i32>} : memref<288x256xf32, #tpu.memory_space<vmem>>, vector<32x256xf32>,
    %c241_i32_66 = arith.constant 241 : i32
    %131 = tpu.dynamic_rotate %101 by %c241_i32_66 dim 1 : vector<32x256xf32>, i32 -> vector<32x256xf32>
    %132 = vector.extract_strided_slice %2 {offsets = [6, 0], sizes = [1, 256], strides = [1, 1]} : vector<9x256xf32> to vector<1x256xf32>
    %133 = vector.broadcast %132 : vector<1x256xf32> to vector<32x256xf32>
    %134 = arith.mulf %131, %133 : vector<32x256xf32>
    %c192 = arith.constant 192 : index
    %c0_67 = arith.constant 0 : index
    %135 = vector.load %arg13[%c192, %c0_67] : memref<288x256xf32, #tpu.memory_space<vmem>>, vector<32x256xf32>
    tpu.vector_store %arg13[%c192, %c0_67], %134 {strides = array<i32>} : memref<288x256xf32, #tpu.memory_space<vmem>>, vector<32x256xf32>,
    %c240_i32_68 = arith.constant 240 : i32
    %136 = tpu.dynamic_rotate %101 by %c240_i32_68 dim 1 : vector<32x256xf32>, i32 -> vector<32x256xf32>
    %137 = vector.extract_strided_slice %2 {offsets = [7, 0], sizes = [1, 256], strides = [1, 1]} : vector<9x256xf32> to vector<1x256xf32>
    %138 = vector.broadcast %137 : vector<1x256xf32> to vector<32x256xf32>
    %139 = arith.mulf %136, %138 : vector<32x256xf32>
    %c224 = arith.constant 224 : index
    %c0_69 = arith.constant 0 : index
    %140 = vector.load %arg13[%c224, %c0_69] : memref<288x256xf32, #tpu.memory_space<vmem>>, vector<32x256xf32>
    tpu.vector_store %arg13[%c224, %c0_69], %139 {strides = array<i32>} : memref<288x256xf32, #tpu.memory_space<vmem>>, vector<32x256xf32>,
    %c239_i32_70 = arith.constant 239 : i32
    %141 = tpu.dynamic_rotate %101 by %c239_i32_70 dim 1 : vector<32x256xf32>, i32 -> vector<32x256xf32>
    %142 = vector.extract_strided_slice %2 {offsets = [8, 0], sizes = [1, 256], strides = [1, 1]} : vector<9x256xf32> to vector<1x256xf32>
    %143 = vector.broadcast %142 : vector<1x256xf32> to vector<32x256xf32>
    %144 = arith.mulf %141, %143 : vector<32x256xf32>
    %c256 = arith.constant 256 : index
    %c0_71 = arith.constant 0 : index
    %145 = vector.load %arg13[%c256, %c0_71] : memref<288x256xf32, #tpu.memory_space<vmem>>, vector<32x256xf32>
    tpu.vector_store %arg13[%c256, %c0_71], %144 {strides = array<i32>} : memref<288x256xf32, #tpu.memory_space<vmem>>, vector<32x256xf32>,
    %c0_72 = arith.constant 0 : index
    %c0_73 = arith.constant 0 : index
    %146 = vector.load %arg9[%c0_72, %c0_73] : memref<1x288xf32, #tpu.memory_space<vmem>>, vector<1x288xf32>
    %c0_74 = arith.constant 0 : index
    %c0_75 = arith.constant 0 : index
    %147 = vector.load %arg13[%c0_74, %c0_75] : memref<288x256xf32, #tpu.memory_space<vmem>>, vector<288x256xf32>
    %cst_76 = arith.constant dense<0.000000e+00> : vector<1x256xf32>
    %148 = tpu.matmul %146, %147, %cst_76 {dimension_numbers = #tpu.dot_dimension_numbers<[1], [0], [0], [1], [0, 0, 1, 1], [], []>} : vector<1x288xf32>, vector<288x256xf32>, vector<1x256xf32> -> vector<1x256xf32>
    %c0_77 = arith.constant 0 : index
    %149 = memref.load %arg1[%c0_77] : memref<1xf32, #tpu.memory_space<smem>>
    %150 = vector.broadcast %149 : f32 to vector<1x256xf32>
    %151 = arith.addf %148, %150 : vector<1x256xf32>
    %cst_78 = arith.constant 0.000000e+00 : f32
    %152 = vector.broadcast %cst_78 : f32 to vector<1x256xf32>
    %153 = arith.maximumf %151, %152 : vector<1x256xf32>
    %154 = arith.subf %1, %153 : vector<1x256xf32>
    %c0_79 = arith.constant 0 : index
    %c0_80 = arith.constant 0 : index
    %c0_81 = arith.constant 0 : index
    %155 = vector.load %arg10[%c0_79, %c0_80, %c0_81] : memref<1x1x256xf32, #tpu.memory_space<vmem>>, vector<1x1x256xf32>
    %156 = vector.shape_cast %155 : vector<1x1x256xf32> to vector<1x256xf32>
    %157 = vector.shape_cast %154 : vector<1x256xf32> to vector<1x1x256xf32>
    tpu.vector_store %arg10[%c0_79, %c0_80, %c0_81], %157 {strides = array<i32>} : memref<1x1x256xf32, #tpu.memory_space<vmem>>, vector<1x1x256xf32>,
    return
  }
  func.func @transform_0(%arg0: i32) -> i32 {
    %c0_i32 = arith.constant 0 : i32
    %c0_i32_0 = arith.constant 0 : i32
    return %c0_i32 : i32
  }
  func.func @transform_1(%arg0: i32) -> (i32, i32) {
    %c0_i32 = arith.constant 0 : i32
    %c0_i32_0 = arith.constant 0 : i32
    %c0_i32_1 = arith.constant 0 : i32
    return %c0_i32, %c0_i32_0 : i32, i32
  }
  func.func @transform_2(%arg0: i32) -> (i32, i32, i32) {
    %c0_i32 = arith.constant 0 : i32
    %c0_i32_0 = arith.constant 0 : i32
    %c0_i32_1 = arith.constant 0 : i32
    return %arg0, %c0_i32, %c0_i32_0 : i32, i32, i32
  }
  func.func @transform_3(%arg0: i32) -> (i32, i32, i32) {
    %c0_i32 = arith.constant 0 : i32
    %c0_i32_0 = arith.constant 0 : i32
    %c0_i32_1 = arith.constant 0 : i32
    return %arg0, %c0_i32, %c0_i32_0 : i32, i32, i32
  }
  func.func @transform_4(%arg0: i32) -> (i32, i32) {
    %c0_i32 = arith.constant 0 : i32
    %c0_i32_0 = arith.constant 0 : i32
    %c0_i32_1 = arith.constant 0 : i32
    return %c0_i32, %c0_i32_0 : i32, i32
  }
  func.func @transform_5(%arg0: i32) -> (i32, i32) {
    %c0_i32 = arith.constant 0 : i32
    %c0_i32_0 = arith.constant 0 : i32
    %c0_i32_1 = arith.constant 0 : i32
    return %c0_i32, %c0_i32_0 : i32, i32
  }
  func.func @transform_6(%arg0: i32) -> (i32, i32) {
    %c0_i32 = arith.constant 0 : i32
    %c0_i32_0 = arith.constant 0 : i32
    %c0_i32_1 = arith.constant 0 : i32
    return %c0_i32, %c0_i32_0 : i32, i32
  }
  func.func @transform_7(%arg0: i32) -> (i32, i32) {
    %c0_i32 = arith.constant 0 : i32
    %c0_i32_0 = arith.constant 0 : i32
    %c0_i32_1 = arith.constant 0 : i32
    return %c0_i32, %c0_i32_0 : i32, i32
  }
  func.func @transform_8(%arg0: i32) -> (i32, i32) {
    %c0_i32 = arith.constant 0 : i32
    %c0_i32_0 = arith.constant 0 : i32
    %c0_i32_1 = arith.constant 0 : i32
    return %c0_i32, %c0_i32_0 : i32, i32
  }
  func.func @transform_9(%arg0: i32) -> (i32, i32, i32) {
    %c0_i32 = arith.constant 0 : i32
    %c0_i32_0 = arith.constant 0 : i32
    %c0_i32_1 = arith.constant 0 : i32
    return %arg0, %c0_i32, %c0_i32_0 : i32, i32, i32
  }
}

</mosaic_0001>

<llo_original>
// kernel: convnet_forward.1
$region0: #{convnet_forward.1}
  #allocation0 [shape = 'u32[]', space=smem, size = 0x4, offset = 0x4, fixed_abs, tag = 'smem constant byte address 0x4 - core index']
  #allocation1 [shape = 'u32[144,128]{1,0:T(1,128)}', space=vmem, size = 0x12000, scoped, tag = 'internal scratch']
  #allocation2 [shape = 'f32[9,256]{1,0:T(8,128)}', space=vmem, size = 0x4000, scoped, tag = 'scratch operand']
  #allocation3 [shape = 'f32[144,256]{1,0:T(8,128)}', space=vmem, size = 0x24000, scoped, tag = 'scratch operand']
  #allocation4 [shape = 'f32[288,256]{1,0:T(8,128)}', space=vmem, size = 0x48000, scoped, tag = 'scratch operand']
  #allocation5 [shape = 'f32[1]{0:T(128)S(6)}', space=smem, size = 0x200, scoped, tag = 'scoped memory for convnet_forward.1']
  %s0 = inlined_call_operand.<no memory space> [shape: f32[1], index: 0, kind: input, shape index: {}]
  %s1 = inlined_call_operand.vmem [shape: f32[9,256], index: 1, kind: input, shape index: {}]
  %s2 = inlined_call_operand.vmem [shape: f32[2,1,256], index: 2, kind: input, shape index: {}]
  %s3 = inlined_call_operand.vmem [shape: f32[2,1,256], index: 3, kind: input, shape index: {}]
  %s4 = inlined_call_operand.hbm [shape: f32[16,9], index: 4, kind: input, shape index: {}]
  %s5 = inlined_call_operand.vmem [shape: f32[16,1], index: 5, kind: input, shape index: {}]
  %s6 = inlined_call_operand.vmem [shape: f32[32,144], index: 6, kind: input, shape index: {}]
  %s7 = inlined_call_operand.vmem [shape: f32[32,1], index: 7, kind: input, shape index: {}]
  %s8 = inlined_call_operand.vmem [shape: f32[1,288], index: 8, kind: input, shape index: {}]
  %s9 = inlined_call_operand.vmem [shape: f32[2,1,256], index: 9, kind: output, shape index: {}]
  %s10 = sld [smem:[#allocation0]]
  $region73: #{convnet_forward.1} parent=0
    _
  %s12 = ssub.s32 1, %s10
  %s13 = scalar_select 0, %s12, %s10
  %14 = sst [smem:[#allocation5]] %s0
  $region1: #{convnet_forward.1} parent=0
    #allocation6 [shape = 'u8[8192]{0}', space=vmem, size = 0x2000, scoped, tag = 'input window, operand 4, single buffered']
    #allocation7 [shape = 's32[2]{0}', space=sflag, size = 0x8, scoped, tag = 'scoped memory for convnet_forward.1']
    %15 = vsyncpa [#allocation7], 0
    loop: start=0, step=1, limit=4
    $region2: #{convnet_forward.1} parent=1 // loop_pre_header
      _
    $region3: #{convnet_forward.1} parent=1 // loop_header
      %s17 = sphi 0, %s21
      %p18 = scmp.ge.s32.totalorder %s17, 4
      %s25 = sphi 0, %s25
      %s27 = sphi 0, %s25
      %s28 = sphi 0, %s27
      %s42 = sphi 0, %s28
      %s46 = sphi 0, %s46
      %s48 = sphi 0, %s46
      %s49 = sphi 0, %s48
      %s63 = sphi 0, %s49
      %s69 = sphi 0, %s71
      %s72 = sphi 0, %s69
      %s73 = sphi 0, %s72
      %s89 = sphi 0, %s73
      %s95 = sphi 0, %s97
      %s98 = sphi 0, %s95
      %s99 = sphi 0, %s98
      %s115 = sphi 0, %s99
      %s119 = sphi 0, %s119
      %s121 = sphi 0, %s119
      %s122 = sphi 0, %s121
      %s136 = sphi 0, %s122
      %s140 = sphi 0, %s140
      %s142 = sphi 0, %s140
      %s143 = sphi 0, %s142
      %s157 = sphi 0, %s143
      %s161 = sphi 0, %s161
      %s163 = sphi 0, %s161
      %s164 = sphi 0, %s163
      %s178 = sphi 0, %s164
      %s182 = sphi 0, %s182
      %s184 = sphi 0, %s182
      %s185 = sphi 0, %s184
      %s199 = sphi 0, %s185
      %s203 = sphi 0, %s203
      %s205 = sphi 0, %s203
      %s206 = sphi 0, %s205
      %s220 = sphi 0, %s206
      %s226 = sphi 0, %s228
      %s229 = sphi 0, %s226
      %s230 = sphi 0, %s229
      %s246 = sphi 0, %s230
    $region4: #{convnet_forward.1} parent=1 // loop_header_branch
      %20 = sbr.rel (%p18) target = $region8
    $region5: #{convnet_forward.1} parent=1 // loop_body
      %s22 = ssub.s32 %s17, 1
      %s23 = ssub.s32 %s17, 2
      %s24 = sadd.s32 %s17, 1
      %s26 = sadd.s32 %s25, 1
      %p29 = scmp.eq.s32.totalorder %s17, 1
      %p30 = scmp.ne.s32.totalorder %s25, %s27
      %p31 = scmp.eq.s32.totalorder %s17, 0
      %p32 = por %p30, %p31
      %p33 = scmp.ne.s32.totalorder %s25, %s27
      %p34 = scmp.eq.s32.totalorder %s22, 1
      %p35 = por %p33, %p34
      %p36 = scmp.ne.s32.totalorder %s27, %s28
      %p37 = scmp.eq.s32.totalorder %s22, 0
      %p38 = por %p36, %p37
      %p39 = scmp.ne.s32.totalorder %s27, %s28
      %p40 = scmp.eq.s32.totalorder %s23, 1
      %p41 = por %p39, %p40
      %p43 = scmp.ne.s32.totalorder %s28, %s42
      %p44 = scmp.eq.s32.totalorder %s23, 0
      %p45 = por %p43, %p44
      %s47 = sadd.s32 %s46, 1
      %p50 = scmp.eq.s32.totalorder %s17, 1
      %p51 = scmp.ne.s32.totalorder %s46, %s48
      %p52 = scmp.eq.s32.totalorder %s17, 0
      %p53 = por %p51, %p52
      %p54 = scmp.ne.s32.totalorder %s46, %s48
      %p55 = scmp.eq.s32.totalorder %s22, 1
      %p56 = por %p54, %p55
      %p57 = scmp.ne.s32.totalorder %s48, %s49
      %p58 = scmp.eq.s32.totalorder %s22, 0
      %p59 = por %p57, %p58
      %p60 = scmp.ne.s32.totalorder %s48, %s49
      %p61 = scmp.eq.s32.totalorder %s23, 1
      %p62 = por %p60, %p61
      %p64 = scmp.ne.s32.totalorder %s49, %s63
      %p65 = scmp.eq.s32.totalorder %s23, 0
      %p66 = por %p64, %p65
      %s67 = ssub.s32 %s17, %s24
      %p68 = scmp.eq.s32.totalorder %s67, 0
      %s70 = sadd.s32 %s69, 1
      %s71 = scalar_select %p68, %s69, %s70
      %p74 = pneg %p68
      %p75 = scmp.eq.s32.totalorder %s17, 1
      %p76 = por %p74, %p75
      %p77 = scmp.ne.s32.totalorder %s69, %s72
      %p78 = scmp.eq.s32.totalorder %s17, 0
      %p79 = por %p77, %p78
      %p80 = scmp.ne.s32.totalorder %s69, %s72
      %p81 = scmp.eq.s32.totalorder %s22, 1
      %p82 = por %p80, %p81
      %p83 = scmp.ne.s32.totalorder %s72, %s73
      %p84 = scmp.eq.s32.totalorder %s22, 0
      %p85 = por %p83, %p84
      %p86 = scmp.ne.s32.totalorder %s72, %s73
      %p87 = scmp.eq.s32.totalorder %s23, 1
      %p88 = por %p86, %p87
      %p90 = scmp.ne.s32.totalorder %s73, %s89
      %p91 = scmp.eq.s32.totalorder %s23, 0
      %p92 = por %p90, %p91
      %s93 = ssub.s32 %s17, %s24
      %p94 = scmp.eq.s32.totalorder %s93, 0
      %s96 = sadd.s32 %s95, 1
      %s97 = scalar_select %p94, %s95, %s96
      %p100 = pneg %p94
      %p101 = scmp.eq.s32.totalorder %s17, 1
      %p102 = por %p100, %p101
      %p103 = scmp.ne.s32.totalorder %s95, %s98
      %p104 = scmp.eq.s32.totalorder %s17, 0
      %p105 = por %p103, %p104
      %p106 = scmp.ne.s32.totalorder %s95, %s98
      %p107 = scmp.eq.s32.totalorder %s22, 1
      %p108 = por %p106, %p107
      %p109 = scmp.ne.s32.totalorder %s98, %s99
      %p110 = scmp.eq.s32.totalorder %s22, 0
      %p111 = por %p109, %p110
      %p112 = scmp.ne.s32.totalorder %s98, %s99
      %p113 = scmp.eq.s32.totalorder %s23, 1
      %p114 = por %p112, %p113
      %p116 = scmp.ne.s32.totalorder %s99, %s115
      %p117 = scmp.eq.s32.totalorder %s23, 0
      %p118 = por %p116, %p117
      %s120 = sadd.s32 %s119, 1
      %p123 = scmp.eq.s32.totalorder %s17, 1
      %p124 = scmp.ne.s32.totalorder %s119, %s121
      %p125 = scmp.eq.s32.totalorder %s17, 0
      %p126 = por %p124, %p125
      %p127 = scmp.ne.s32.totalorder %s119, %s121
      %p128 = scmp.eq.s32.totalorder %s22, 1
      %p129 = por %p127, %p128
      %p130 = scmp.ne.s32.totalorder %s121, %s122
      %p131 = scmp.eq.s32.totalorder %s22, 0
      %p132 = por %p130, %p131
      %p133 = scmp.ne.s32.totalorder %s121, %s122
      %p134 = scmp.eq.s32.totalorder %s23, 1
      %p135 = por %p133, %p134
      %p137 = scmp.ne.s32.totalorder %s122, %s136
      %p138 = scmp.eq.s32.totalorder %s23, 0
      %p139 = por %p137, %p138
      %s141 = sadd.s32 %s140, 1
      %p144 = scmp.eq.s32.totalorder %s17, 1
      %p145 = scmp.ne.s32.totalorder %s140, %s142
      %p146 = scmp.eq.s32.totalorder %s17, 0
      %p147 = por %p145, %p146
      %p148 = scmp.ne.s32.totalorder %s140, %s142
      %p149 = scmp.eq.s32.totalorder %s22, 1
      %p150 = por %p148, %p149
      %p151 = scmp.ne.s32.totalorder %s142, %s143
      %p152 = scmp.eq.s32.totalorder %s22, 0
      %p153 = por %p151, %p152
      %p154 = scmp.ne.s32.totalorder %s142, %s143
      %p155 = scmp.eq.s32.totalorder %s23, 1
      %p156 = por %p154, %p155
      %p158 = scmp.ne.s32.totalorder %s143, %s157
      %p159 = scmp.eq.s32.totalorder %s23, 0
      %p160 = por %p158, %p159
      %s162 = sadd.s32 %s161, 1
      %p165 = scmp.eq.s32.totalorder %s17, 1
      %p166 = scmp.ne.s32.totalorder %s161, %s163
      %p167 = scmp.eq.s32.totalorder %s17, 0
      %p168 = por %p166, %p167
      %p169 = scmp.ne.s32.totalorder %s161, %s163
      %p170 = scmp.eq.s32.totalorder %s22, 1
      %p171 = por %p169, %p170
      %p172 = scmp.ne.s32.totalorder %s163, %s164
      %p173 = scmp.eq.s32.totalorder %s22, 0
      %p174 = por %p172, %p173
      %p175 = scmp.ne.s32.totalorder %s163, %s164
      %p176 = scmp.eq.s32.totalorder %s23, 1
      %p177 = por %p175, %p176
      %p179 = scmp.ne.s32.totalorder %s164, %s178
      %p180 = scmp.eq.s32.totalorder %s23, 0
      %p181 = por %p179, %p180
      %s183 = sadd.s32 %s182, 1
      %p186 = scmp.eq.s32.totalorder %s17, 1
      %p187 = scmp.ne.s32.totalorder %s182, %s184
      %p188 = scmp.eq.s32.totalorder %s17, 0
      %p189 = por %p187, %p188
      %p190 = scmp.ne.s32.totalorder %s182, %s184
      %p191 = scmp.eq.s32.totalorder %s22, 1
      %p192 = por %p190, %p191
      %p193 = scmp.ne.s32.totalorder %s184, %s185
      %p194 = scmp.eq.s32.totalorder %s22, 0
      %p195 = por %p193, %p194
      %p196 = scmp.ne.s32.totalorder %s184, %s185
      %p197 = scmp.eq.s32.totalorder %s23, 1
      %p198 = por %p196, %p197
      %p200 = scmp.ne.s32.totalorder %s185, %s199
      %p201 = scmp.eq.s32.totalorder %s23, 0
      %p202 = por %p200, %p201
      %s204 = sadd.s32 %s203, 1
      %p207 = scmp.eq.s32.totalorder %s17, 1
      %p208 = scmp.ne.s32.totalorder %s203, %s205
      %p209 = scmp.eq.s32.totalorder %s17, 0
      %p210 = por %p208, %p209
      %p211 = scmp.ne.s32.totalorder %s203, %s205
      %p212 = scmp.eq.s32.totalorder %s22, 1
      %p213 = por %p211, %p212
      %p214 = scmp.ne.s32.totalorder %s205, %s206
      %p215 = scmp.eq.s32.totalorder %s22, 0
      %p216 = por %p214, %p215
      %p217 = scmp.ne.s32.totalorder %s205, %s206
      %p218 = scmp.eq.s32.totalorder %s23, 1
      %p219 = por %p217, %p218
      %p221 = scmp.ne.s32.totalorder %s206, %s220
      %p222 = scmp.eq.s32.totalorder %s23, 0
      %p223 = por %p221, %p222
      %s224 = ssub.s32 %s17, %s24
      %p225 = scmp.eq.s32.totalorder %s224, 0
      %s227 = sadd.s32 %s226, 1
      %s228 = scalar_select %p225, %s226, %s227
      %p231 = pneg %p225
      %p232 = scmp.eq.s32.totalorder %s17, 1
      %p233 = por %p231, %p232
      %p234 = scmp.ne.s32.totalorder %s226, %s229
      %p235 = scmp.eq.s32.totalorder %s17, 0
      %p236 = por %p234, %p235
      %p237 = scmp.ne.s32.totalorder %s226, %s229
      %p238 = scmp.eq.s32.totalorder %s22, 1
      %p239 = por %p237, %p238
      %p240 = scmp.ne.s32.totalorder %s229, %s230
      %p241 = scmp.eq.s32.totalorder %s22, 0
      %p242 = por %p240, %p241
      %p243 = scmp.ne.s32.totalorder %s229, %s230
      %p244 = scmp.eq.s32.totalorder %s23, 1
      %p245 = por %p243, %p244
      %p247 = scmp.ne.s32.totalorder %s230, %s246
      %p248 = scmp.eq.s32.totalorder %s23, 0
      %p249 = por %p247, %p248
      %p250 = scmp.le.s32.totalorder 1, %s17
      %p251 = scmp.lt.s32.totalorder %s17, 3
      %p252 = pnand %p250, %p251
      %p253 = pneg %p252
      // Predicated region
      $region9: #{convnet_forward.1} parent=5 // pred_check
        _
      $region10: #{convnet_forward.1} parent=5 // pred_check_branch
        %255 = sbr.rel (%p252) target = $region12
      $region11: #{convnet_forward.1} parent=5 // pred_region
        %s256 = ssub.s32 %s17, 1
        // Predicated region
        $region13: #{convnet_forward.1} parent=11 // pred_check
          %p257 = pneg %p38
        $region14: #{convnet_forward.1} parent=11 // pred_check_branch
          %259 = sbr.rel (%p257) target = $region16
        $region15: #{convnet_forward.1} parent=11 // pred_region
          _
        $region16: #{convnet_forward.1} parent=11 // pred_fallthru
          _
        // Predicated region
        $region17: #{convnet_forward.1} parent=11 // pred_check
          %p260 = pneg %p59
        $region18: #{convnet_forward.1} parent=11 // pred_check_branch
          %262 = sbr.rel (%p260) target = $region20
        $region19: #{convnet_forward.1} parent=11 // pred_region
          _
        $region20: #{convnet_forward.1} parent=11 // pred_fallthru
          _
        // Predicated region
        $region21: #{convnet_forward.1} parent=11 // pred_check
          %p263 = pneg %p132
        $region22: #{convnet_forward.1} parent=11 // pred_check_branch
          %265 = sbr.rel (%p263) target = $region24
        $region23: #{convnet_forward.1} parent=11 // pred_region
          %s267 = ssub.s32 256, 256
          %268 = vsyncadd [#allocation7], %s267
          %s269 = sshll.u32 [#allocation6], 4
          %s270 = int_to_ptr.vmem [resolvable:$true] %s269
          %275 = dma.hbm_to_vmem [thread:$0]  %s4, 256, %s270, [#allocation7], 128, 128, 8
        $region24: #{convnet_forward.1} parent=11 // pred_fallthru
          _
        // Predicated region
        $region25: #{convnet_forward.1} parent=11 // pred_check
          %p276 = pneg %p153
        $region26: #{convnet_forward.1} parent=11 // pred_check_branch
          %278 = sbr.rel (%p276) target = $region28
        $region27: #{convnet_forward.1} parent=11 // pred_region
          _
        $region28: #{convnet_forward.1} parent=11 // pred_fallthru
          _
        // Predicated region
        $region29: #{convnet_forward.1} parent=11 // pred_check
          %p279 = pneg %p174
        $region30: #{convnet_forward.1} parent=11 // pred_check_branch
          %281 = sbr.rel (%p279) target = $region32
        $region31: #{convnet_forward.1} parent=11 // pred_region
          _
        $region32: #{convnet_forward.1} parent=11 // pred_fallthru
          _
        // Predicated region
        $region33: #{convnet_forward.1} parent=11 // pred_check
          %p282 = pneg %p195
        $region34: #{convnet_forward.1} parent=11 // pred_check_branch
          %284 = sbr.rel (%p282) target = $region36
        $region35: #{convnet_forward.1} parent=11 // pred_region
          _
        $region36: #{convnet_forward.1} parent=11 // pred_fallthru
          _
        // Predicated region
        $region37: #{convnet_forward.1} parent=11 // pred_check
          %p285 = pneg %p216
        $region38: #{convnet_forward.1} parent=11 // pred_check_branch
          %287 = sbr.rel (%p285) target = $region40
        $region39: #{convnet_forward.1} parent=11 // pred_region
          _
        $region40: #{convnet_forward.1} parent=11 // pred_fallthru
          _
      $region12: #{convnet_forward.1} parent=5 // pred_fallthru
        _
      %p288 = scmp.lt.s32.totalorder %s17, 2
      // Predicated region
      $region41: #{convnet_forward.1} parent=5 // pred_check
        %p289 = pneg %p288
      $region42: #{convnet_forward.1} parent=5 // pred_check_branch
        %291 = sbr.rel (%p289) target = $region44
      $region43: #{convnet_forward.1} parent=5 // pred_region
        // Predicated region
        $region45: #{convnet_forward.1} parent=43 // pred_check
          %p292 = pneg %p79
        $region46: #{convnet_forward.1} parent=43 // pred_check_branch
          %294 = sbr.rel (%p292) target = $region48
        $region47: #{convnet_forward.1} parent=43 // pred_region
          %p295 = scmp.lt.s32.totalorder %s17, 1
          %s296 = scalar_select %p295, %s17, 1
          %s297 = smul.addr %s296, 2
          %s298 = scalar_lea.vmem %s2, %s297
        $region48: #{convnet_forward.1} parent=43 // pred_fallthru
          _
        // Predicated region
        $region49: #{convnet_forward.1} parent=43 // pred_check
          %p299 = pneg %p105
        $region50: #{convnet_forward.1} parent=43 // pred_check_branch
          %301 = sbr.rel (%p299) target = $region52
        $region51: #{convnet_forward.1} parent=43 // pred_region
          %p302 = scmp.lt.s32.totalorder %s17, 1
          %s303 = scalar_select %p302, %s17, 1
          %s304 = smul.addr %s303, 2
          %s305 = scalar_lea.vmem %s3, %s304
        $region52: #{convnet_forward.1} parent=43 // pred_fallthru
          _
      $region44: #{convnet_forward.1} parent=5 // pred_fallthru
        _
      %p306 = scmp.le.s32.totalorder 1, %s17
      %p307 = scmp.lt.s32.totalorder %s17, 3
      %p308 = pnand %p306, %p307
      %p309 = pneg %p308
      // Predicated region
      $region53: #{convnet_forward.1} parent=5 // pred_check
        _
      $region54: #{convnet_forward.1} parent=5 // pred_check_branch
        %311 = sbr.rel (%p308) target = $region56
      $region55: #{convnet_forward.1} parent=5 // pred_region
        %s312 = ssub.s32 %s17, 1
        // Predicated region
        $region57: #{convnet_forward.1} parent=55 // pred_check
          %p313 = pneg %p132
        $region58: #{convnet_forward.1} parent=55 // pred_check_branch
          %315 = sbr.rel (%p313) target = $region60
        $region59: #{convnet_forward.1} parent=55 // pred_region
          %316 = dma.done [#allocation7], 256
        $region60: #{convnet_forward.1} parent=55 // pred_fallthru
          _
        %p317 = pneg %p38
        %p318 = pneg %p35
        %p319 = pneg %p59
        %p320 = pneg %p56
        %p321 = scmp.lt.s32.totalorder %s22, 1
        %s322 = scalar_select %p321, %s22, 1
        %s323 = smul.addr %s322, 2
        %s324 = scalar_lea.vmem %s2, %s323
        %p325 = pneg %p85
        %p326 = pneg %p82
        %p327 = scmp.lt.s32.totalorder %s22, 1
        %s328 = scalar_select %p327, %s22, 1
        %s329 = smul.addr %s328, 2
        %s330 = scalar_lea.vmem %s3, %s329
        %p331 = pneg %p111
        %p332 = pneg %p108
        %p333 = pneg %p132
        %p334 = pneg %p129
        %p335 = pneg %p153
        %p336 = pneg %p150
        %p337 = pneg %p174
        %p338 = pneg %p171
        %p339 = pneg %p195
        %p340 = pneg %p192
        %p341 = pneg %p216
        %p342 = pneg %p213
        %p343 = pneg %p242
        %p344 = pneg %p239
        %p345 = scmp.lt.s32.totalorder %s22, 1
        %s346 = scalar_select %p345, %s22, 1
        %s347 = smul.addr %s346, 2
        %s348 = scalar_lea.vmem %s9, %s347
        %p349 = scmp.lt.s32.totalorder %s22, 1
        %s350 = scalar_select %p349, %s22, 1
        %s351 = smul.addr %s350, 2
        %s352 = scalar_lea.vmem %s2, %s351
        %p353 = scmp.lt.s32.totalorder %s22, 1
        %s354 = scalar_select %p353, %s22, 1
        %s355 = smul.addr %s354, 2
        %s356 = scalar_lea.vmem %s3, %s355
        %p357 = scmp.lt.s32.totalorder %s22, 1
        %s358 = scalar_select %p357, %s22, 1
        %s359 = smul.addr %s358, 2
        %s360 = scalar_lea.vmem %s9, %s359
        %v361 = vld [vmem:[%s352] sm:$0x3]
        %v362 = vld [vmem:[%s1] sm:$0xff]
        %v363 = vld [vmem:[%s1 + $0x8] sm:$0xff]
        %v364 = vld [vmem:[%s1 + $0x10] sm:$0x1]
        %v365 = vld [vmem:[%s1 + $0x18] sm:$0x1]
        %v367 = vlaneseq
        %v368 = vshrl.u32 %v367, 7
        %v369 = vsub.s32 0, %v368
        %v370 = vrot.slane %v361, %v369
        %v371 = vlaneseq
        %v372 = vshrl.u32 %v371, 7
        %v373 = vsub.s32 1, %v372
        %v374 = vrot.slane %v361, %v373
        %377 = vrot.lane.b32.xlu0 %v370, 17
        %v378 = vpop.permute.xlu0 %377
        %379 = vrot.lane.b32.xlu0 %v374, 17
        %v380 = vpop.permute.xlu0 %379
        %v381 = vlaneseq
        %v382 = vand.u32 %v381, 127
        %vm383 = vcmp.lt.s32.totalorder %v382, 17
        %v384 = vsel %vm383, %v378, %v380
        %v385 = vsel %vm383, %v380, %v378
        %v386 = vmul.f32 %v385, %v362
        %v387 = vmul.f32 %v384, %v363
        %v390 = vcombine.low %v386, %v387
        %v392 = vunpack.c.l.s4 1966171168
        %v393 = vunpack.c.0.s8 %v392
        %v394 = vlaneseq
        %v395 = vshrl.u32 %v394, 7
        %v396 = vsub.s32 %v393, %v395
        %v397 = vrot.slane %v390, %v396
        %v399 = vunpack.c.l.s4 1966171168
        %v400 = vunpack.c.0.s8 %v399
        %v401 = vlaneseq
        %v402 = vshrl.u32 %v401, 7
        %v403 = vsub.s32 %v400, %v402
        %v404 = vrot.slane %v397, %v403
        %v406 = vlaneseq
        %vm407 = vcmp.ge.s32.totalorder %v406, 0
        %vm408 = vcmp.lt.s32.totalorder %v406, 256
        %vm409 = vmand %vm407, %vm408
        %410 = vst.msk [vmem:[#allocation2] ss:$8 sm:$0x3] %vm409, %v404
        %411 = vst.msk [vmem:[#allocation2] ss:$8 sm:$0x0] %vm409, %v404
        %412 = vrot.lane.b32.xlu0 %v370, 16
        %v413 = vpop.permute.xlu0 %412
        %414 = vrot.lane.b32.xlu0 %v374, 16
        %v415 = vpop.permute.xlu0 %414
        %vm416 = vcmp.lt.s32.totalorder %v382, 16
        %v417 = vsel %vm416, %v413, %v415
        %v418 = vsel %vm416, %v415, %v413
        %v421 = vrot.slane %v362, 1
        %v422 = vrot.slane %v363, 1
        %v425 = vmul.f32 %v418, %v421
        %v426 = vmul.f32 %v417, %v422
        %v429 = vcombine.low %v425, %v426
        %v431 = vunpack.c.l.s4 1966171168
        %v432 = vunpack.c.0.s8 %v431
        %v433 = vlaneseq
        %v434 = vshrl.u32 %v433, 7
        %v435 = vsub.s32 %v432, %v434
        %v436 = vrot.slane %v429, %v435
        %v438 = vunpack.c.l.s4 1966171168
        %v439 = vunpack.c.0.s8 %v438
        %v440 = vlaneseq
        %v441 = vshrl.u32 %v440, 7
        %v442 = vsub.s32 %v439, %v441
        %v443 = vrot.slane %v436, %v442
        %s445 = scalar_lea.vmem [#allocation2], 1
        %446 = vst.msk [vmem:[%s445] ss:$8 sm:$0x3] %vm409, %v443
        %447 = vst.msk [vmem:[%s445] ss:$8 sm:$0x0] %vm409, %v443
        %448 = vrot.lane.b32.xlu0 %v370, 15
        %v449 = vpop.permute.xlu0 %448
        %450 = vrot.lane.b32.xlu0 %v374, 15
        %v451 = vpop.permute.xlu0 %450
        %vm452 = vcmp.lt.s32.totalorder %v382, 15
        %v453 = vsel %vm452, %v449, %v451
        %v454 = vsel %vm452, %v451, %v449
        %v455 = vrot.slane %v362, 2
        %v456 = vrot.slane %v363, 2
        %v459 = vmul.f32 %v454, %v455
        %v460 = vmul.f32 %v453, %v456
        %v463 = vcombine.low %v459, %v460
        %v465 = vunpack.c.l.s4 1966171168
        %v466 = vunpack.c.0.s8 %v465
        %v467 = vlaneseq
        %v468 = vshrl.u32 %v467, 7
        %v469 = vsub.s32 %v466, %v468
        %v470 = vrot.slane %v463, %v469
        %v472 = vunpack.c.l.s4 1966171168
        %v473 = vunpack.c.0.s8 %v472
        %v474 = vlaneseq
        %v475 = vshrl.u32 %v474, 7
        %v476 = vsub.s32 %v473, %v475
        %v477 = vrot.slane %v470, %v476
        %s479 = scalar_lea.vmem [#allocation2], 2
        %480 = vst.msk [vmem:[%s479] ss:$8 sm:$0x3] %vm409, %v477
        %481 = vst.msk [vmem:[%s479] ss:$8 sm:$0x0] %vm409, %v477
        %482 = vrot.lane.b32.xlu0 %v370, 1
        %v483 = vpop.permute.xlu0 %482
        %484 = vrot.lane.b32.xlu0 %v374, 1
        %v485 = vpop.permute.xlu0 %484
        %vm486 = vcmp.lt.s32.totalorder %v382, 1
        %v487 = vsel %vm486, %v483, %v485
        %v488 = vsel %vm486, %v485, %v483
        %v489 = vrot.slane %v362, 3
        %v490 = vrot.slane %v363, 3
        %v493 = vmul.f32 %v488, %v489
        %v494 = vmul.f32 %v487, %v490
        %v497 = vcombine.low %v493, %v494
        %v499 = vunpack.c.l.s4 1966171168
        %v500 = vunpack.c.0.s8 %v499
        %v501 = vlaneseq
        %v502 = vshrl.u32 %v501, 7
        %v503 = vsub.s32 %v500, %v502
        %v504 = vrot.slane %v497, %v503
        %v506 = vunpack.c.l.s4 1966171168
        %v507 = vunpack.c.0.s8 %v506
        %v508 = vlaneseq
        %v509 = vshrl.u32 %v508, 7
        %v510 = vsub.s32 %v507, %v509
        %v511 = vrot.slane %v504, %v510
        %s513 = scalar_lea.vmem [#allocation2], 3
        %514 = vst.msk [vmem:[%s513] ss:$8 sm:$0x3] %vm409, %v511
        %515 = vst.msk [vmem:[%s513] ss:$8 sm:$0x0] %vm409, %v511
        %v516 = vcombine.high %v362, %v363
        %v518 = vunpack.c.l.s4 1966171168
        %v519 = vunpack.c.0.s8 %v518
        %v520 = vlaneseq
        %v521 = vshrl.u32 %v520, 7
        %v522 = vsub.s32 %v519, %v521
        %v523 = vrot.slane %v516, %v522
        %v525 = vunpack.c.l.s4 1966171168
        %v526 = vunpack.c.0.s8 %v525
        %v527 = vlaneseq
        %v528 = vshrl.u32 %v527, 7
        %v529 = vsub.s32 %v526, %v528
        %v530 = vrot.slane %v523, %v529
        %v532 = vmul.f32 %v361, %v530
        %s533 = scalar_lea.vmem [#allocation2], 4
        %534 = vst.msk [vmem:[%s533] ss:$8 sm:$0x3] %vm409, %v532
        %535 = vst.msk [vmem:[%s533] ss:$8 sm:$0x0] %vm409, %v532
        %536 = vrot.lane.b32.xlu0 %v370, 127
        %v537 = vpop.permute.xlu0 %536
        %538 = vrot.lane.b32.xlu0 %v374, 127
        %v539 = vpop.permute.xlu0 %538
        %vm540 = vcmp.lt.s32.totalorder %v382, 127
        %v541 = vsel %vm540, %v537, %v539
        %v542 = vsel %vm540, %v539, %v537
        %v543 = vrot.slane %v362, 5
        %v544 = vrot.slane %v363, 5
        %v547 = vmul.f32 %v541, %v543
        %v548 = vmul.f32 %v542, %v544
        %v551 = vcombine.low %v547, %v548
        %v553 = vunpack.c.l.s4 1966171168
        %v554 = vunpack.c.0.s8 %v553
        %v555 = vlaneseq
        %v556 = vshrl.u32 %v555, 7
        %v557 = vsub.s32 %v554, %v556
        %v558 = vrot.slane %v551, %v557
        %v560 = vunpack.c.l.s4 1966171168
        %v561 = vunpack.c.0.s8 %v560
        %v562 = vlaneseq
        %v563 = vshrl.u32 %v562, 7
        %v564 = vsub.s32 %v561, %v563
        %v565 = vrot.slane %v558, %v564
        %s567 = scalar_lea.vmem [#allocation2], 5
        %568 = vst.msk [vmem:[%s567] ss:$8 sm:$0x3] %vm409, %v565
        %569 = vst.msk [vmem:[%s567] ss:$8 sm:$0x0] %vm409, %v565
        %570 = vrot.lane.b32.xlu0 %v370, 113
        %v571 = vpop.permute.xlu0 %570
        %572 = vrot.lane.b32.xlu0 %v374, 113
        %v573 = vpop.permute.xlu0 %572
        %vm574 = vcmp.lt.s32.totalorder %v382, 113
        %v575 = vsel %vm574, %v571, %v573
        %v576 = vsel %vm574, %v573, %v571
        %v577 = vrot.slane %v362, 6
        %v578 = vrot.slane %v363, 6
        %v581 = vmul.f32 %v575, %v577
        %v582 = vmul.f32 %v576, %v578
        %v585 = vcombine.low %v581, %v582
        %v587 = vunpack.c.l.s4 1966171168
        %v588 = vunpack.c.0.s8 %v587
        %v589 = vlaneseq
        %v590 = vshrl.u32 %v589, 7
        %v591 = vsub.s32 %v588, %v590
        %v592 = vrot.slane %v585, %v591
        %v594 = vunpack.c.l.s4 1966171168
        %v595 = vunpack.c.0.s8 %v594
        %v596 = vlaneseq
        %v597 = vshrl.u32 %v596, 7
        %v598 = vsub.s32 %v595, %v597
        %v599 = vrot.slane %v592, %v598
        %s601 = scalar_lea.vmem [#allocation2], 6
        %602 = vst.msk [vmem:[%s601] ss:$8 sm:$0x3] %vm409, %v599
        %603 = vst.msk [vmem:[%s601] ss:$8 sm:$0x0] %vm409, %v599
        %604 = vrot.lane.b32.xlu0 %v370, 112
        %v605 = vpop.permute.xlu0 %604
        %606 = vrot.lane.b32.xlu0 %v374, 112
        %v607 = vpop.permute.xlu0 %606
        %vm608 = vcmp.lt.s32.totalorder %v382, 112
        %v609 = vsel %vm608, %v605, %v607
        %v610 = vsel %vm608, %v607, %v605
        %v611 = vrot.slane %v362, 7
        %v612 = vrot.slane %v363, 7
        %v615 = vmul.f32 %v609, %v611
        %v616 = vmul.f32 %v610, %v612
        %v619 = vcombine.low %v615, %v616
        %v621 = vunpack.c.l.s4 1966171168
        %v622 = vunpack.c.0.s8 %v621
        %v623 = vlaneseq
        %v624 = vshrl.u32 %v623, 7
        %v625 = vsub.s32 %v622, %v624
        %v626 = vrot.slane %v619, %v625
        %v628 = vunpack.c.l.s4 1966171168
        %v629 = vunpack.c.0.s8 %v628
        %v630 = vlaneseq
        %v631 = vshrl.u32 %v630, 7
        %v632 = vsub.s32 %v629, %v631
        %v633 = vrot.slane %v626, %v632
        %s635 = scalar_lea.vmem [#allocation2], 7
        %636 = vst.msk [vmem:[%s635] ss:$8 sm:$0x3] %vm409, %v633
        %637 = vst.msk [vmem:[%s635] ss:$8 sm:$0x0] %vm409, %v633
        %638 = vrot.lane.b32.xlu0 %v370, 111
        %v639 = vpop.permute.xlu0 %638
        %640 = vrot.lane.b32.xlu0 %v374, 111
        %v641 = vpop.permute.xlu0 %640
        %vm642 = vcmp.lt.s32.totalorder %v382, 111
        %v643 = vsel %vm642, %v639, %v641
        %v644 = vsel %vm642, %v641, %v639
        %v645 = vmul.f32 %v643, %v364
        %v646 = vmul.f32 %v644, %v365
        %v649 = vcombine.low %v645, %v646
        %v651 = vunpack.c.l.s4 1966171168
        %v652 = vunpack.c.0.s8 %v651
        %v653 = vlaneseq
        %v654 = vshrl.u32 %v653, 7
        %v655 = vsub.s32 %v652, %v654
        %v656 = vrot.slane %v649, %v655
        %v658 = vunpack.c.l.s4 1966171168
        %v659 = vunpack.c.0.s8 %v658
        %v660 = vlaneseq
        %v661 = vshrl.u32 %v660, 7
        %v662 = vsub.s32 %v659, %v661
        %v663 = vrot.slane %v656, %v662
        %s665 = scalar_lea.vmem [#allocation2], 16
        %666 = vst.msk [vmem:[%s665] ss:$8 sm:$0x3] %vm409, %v663
        %667 = vst.msk [vmem:[%s665] ss:$8 sm:$0x0] %vm409, %v663
        %v668 = vld [vmem:[#allocation6] sm:$0xff]
        %v669 = vld [vmem:[#allocation6 + $0x8] sm:$0xff]
        %v670 = vld [vmem:[#allocation2] sm:$0xff]
        %v671 = vld [vmem:[#allocation2 + $0x8] sm:$0xff]
        %v672 = vld [vmem:[#allocation2 + $0x10] sm:$0x1]
        %v673 = vld [vmem:[#allocation2 + $0x18] sm:$0x1]
        %v674 = vld [vmem:[%s5] sm:$0xff]
        %v675 = vld [vmem:[%s5 + $0x8] sm:$0xff]
        %677 = vset.pattern.permute.xlu0 0
        %678 = vperm.xlu0 %677, %v674
        %v679 = vpop.permute.xlu0 %678
        %682 = vset.pattern.permute.xlu0 0
        %683 = vperm.xlu0 %682, %v675
        %v684 = vpop.permute.xlu0 %683
        %vm686 = vcmask 72704
        %v688 = vsel %vm686, %v668, 0
        %v691 = vsel %vm686, %v669, 0
        %vm693 = vcmask 1040384
        %v695 = vsel %vm693, %v672, 0
        %v698 = vsel %vm693, %v673, 0
        %700 = vmatprep.subr.mxu0 0.0
        %701 = vmatpush1.msra.mxu0 0.0
        %702 = vmatprep.subr.mxu0 0.0
        %703 = vmatpush1.msra.mxu0 0.0
        %704 = vmatprep.subr.mxu0 0.0
        %705 = vmatpush1.msra.mxu0 0.0
        %706 = vmatprep.subr.mxu0 0.0
        %707 = vmatpush1.msra.mxu0 0.0
        %708 = vmatprep.subr.mxu0 0.0
        %709 = vmatpush1.msra.mxu0 0.0
        %710 = vmatprep.subr.mxu0 0.0
        %711 = vmatpush1.msra.mxu0 0.0
        %712 = vmatprep.subr.mxu0 0.0
        %713 = vmatpush1.msra.mxu0 0.0
        %714 = vmatprep.subr.mxu0 0.0
        %715 = vmatpush1.msra.mxu0 0.0
        %716 = vmatprep.subr.mxu0 0.0
        %717 = vmatpush1.msra.mxu0 0.0
        %718 = vmatprep.subr.mxu0 0.0
        %719 = vmatpush1.msra.mxu0 0.0
        %720 = vmatprep.subr.mxu0 0.0
        %721 = vmatpush1.msra.mxu0 0.0
        %722 = vmatprep.subr.mxu0 0.0
        %723 = vmatpush1.msra.mxu0 0.0
        %724 = vmatprep.subr.mxu0 0.0
        %725 = vmatpush1.msra.mxu0 0.0
        %726 = vmatprep.subr.mxu0 0.0
        %727 = vmatpush1.msra.mxu0 0.0
        %728 = vmatprep.subr.mxu0 %v698
        %729 = vmatpush1.msra.mxu0 %v695
        %730 = vmatprep.subr.mxu0 %v671
        %731 = vmatpush1.msra.mxu0 %v670
        %732 = vmatprep.subr.mxu0 0.0
        %733 = vmatpush2.msra.mxu0 0.0
        %734 = vmatprep.subr.mxu0 0.0
        %735 = vmatpush2.msra.mxu0 0.0
        %736 = vmatprep.subr.mxu0 0.0
        %737 = vmatpush2.msra.mxu0 0.0
        %738 = vmatprep.subr.mxu0 0.0
        %739 = vmatpush2.msra.mxu0 0.0
        %740 = vmatprep.subr.mxu0 0.0
        %741 = vmatpush2.msra.mxu0 0.0
        %742 = vmatprep.subr.mxu0 0.0
        %743 = vmatpush2.msra.mxu0 0.0
        %744 = vmatprep.subr.mxu0 0.0
        %745 = vmatpush2.msra.mxu0 0.0
        %746 = vmatprep.subr.mxu0 0.0
        %747 = vmatpush2.msra.mxu0 0.0
        %748 = vmatprep.subr.mxu0 0.0
        %749 = vmatpush2.msra.mxu0 0.0
        %750 = vmatprep.subr.mxu0 0.0
        %751 = vmatpush2.msra.mxu0 0.0
        %752 = vmatprep.subr.mxu0 0.0
        %753 = vmatpush2.msra.mxu0 0.0
        %754 = vmatprep.subr.mxu0 0.0
        %755 = vmatpush2.msra.mxu0 0.0
        %756 = vmatprep.subr.mxu0 0.0
        %757 = vmatpush2.msra.mxu0 0.0
        %758 = vmatprep.subr.mxu0 0.0
        %759 = vmatpush2.msra.mxu0 0.0
        %760 = vmatprep.subr.mxu0 0.0
        %761 = vmatpush2.msra.mxu0 0.0
        %762 = vmatprep.subr.mxu0 0.0
        %763 = vmatpush2.msra.mxu0 0.0
        %764 = vmatprep.mubr.f32.mxu0 0.0
        %765 = vmatmul.mubr.f32.gmra.mxu0 %v688
        %v766 = vpop.f32.mrf.mxu0
        %v767 = vadd.f32 %v679, %v766
        %v768 = vpop.f32.mrf.mxu0
        %v769 = vadd.f32 %v679, %v768
        %770 = vmatprep.mubr.f32.mxu0 0.0
        %771 = vmatmul.mubr.f32.gmra.mxu0 %v691
        %v772 = vpop.f32.mrf.mxu0
        %v773 = vadd.f32 %v684, %v772
        %v774 = vpop.f32.mrf.mxu0
        %v775 = vadd.f32 %v684, %v774
        %776 = vdwg.mxu0
        %v777 = vmax.f32 %v767, 0.0
        %v778 = vmax.f32 %v769, 0.0
        %v779 = vmax.f32 %v773, 0.0
        %v780 = vmax.f32 %v775, 0.0
        %v781 = vld [vmem:[%s356] sm:$0x3]
        %v783 = vlaneseq
        %v784 = vshrl.u32 %v783, 7
        %v785 = vsub.s32 0, %v784
        %v786 = vrot.slane %v781, %v785
        %v787 = vlaneseq
        %v788 = vshrl.u32 %v787, 7
        %v789 = vsub.s32 1, %v788
        %v790 = vrot.slane %v781, %v789
        %v793 = vmul.f32 %v777, %v786
        %v794 = vmul.f32 %v778, %v790
        %v795 = vmul.f32 %v779, %v786
        %v796 = vmul.f32 %v780, %v790
        %797 = vrot.lane.b32.xlu0 %v793, 17
        %v798 = vpop.permute.xlu0 %797
        %799 = vrot.lane.b32.xlu0 %v795, 17
        %v800 = vpop.permute.xlu0 %799
        %801 = vrot.lane.b32.xlu0 %v794, 17
        %v802 = vpop.permute.xlu0 %801
        %803 = vrot.lane.b32.xlu0 %v796, 17
        %v804 = vpop.permute.xlu0 %803
        %v805 = vsel %vm383, %v798, %v802
        %v806 = vsel %vm383, %v800, %v804
        %v807 = vsel %vm383, %v802, %v798
        %v808 = vsel %vm383, %v804, %v800
        %v809 = vlaneseq
        %v810 = vshrl.u32 %v809, 7
        %v811 = vsub.s32 0, %v810
        %v812 = vrot.slane %v362, %v811
        %v813 = vlaneseq
        %v814 = vshrl.u32 %v813, 7
        %v815 = vsub.s32 0, %v814
        %v816 = vrot.slane %v363, %v815
        %v817 = vmul.f32 %v807, %v812
        %v818 = vmul.f32 %v805, %v816
        %v819 = vmul.f32 %v808, %v812
        %v820 = vmul.f32 %v806, %v816
        %821 = vst [vmem:[#allocation3] sm:$0xff] %v817
        %822 = vst [vmem:[#allocation3 + $0x8] sm:$0xff] %v818
        %823 = vst [vmem:[#allocation3 + $0x10] sm:$0xff] %v819
        %824 = vst [vmem:[#allocation3 + $0x18] sm:$0xff] %v820
        %825 = vrot.lane.b32.xlu0 %v793, 16
        %v826 = vpop.permute.xlu0 %825
        %827 = vrot.lane.b32.xlu0 %v795, 16
        %v828 = vpop.permute.xlu0 %827
        %829 = vrot.lane.b32.xlu0 %v794, 16
        %v830 = vpop.permute.xlu0 %829
        %831 = vrot.lane.b32.xlu0 %v796, 16
        %v832 = vpop.permute.xlu0 %831
        %v833 = vsel %vm416, %v826, %v830
        %v834 = vsel %vm416, %v828, %v832
        %v835 = vsel %vm416, %v830, %v826
        %v836 = vsel %vm416, %v832, %v828
        %v837 = vlaneseq
        %v838 = vshrl.u32 %v837, 7
        %v839 = vsub.s32 1, %v838
        %v840 = vrot.slane %v362, %v839
        %v841 = vlaneseq
        %v842 = vshrl.u32 %v841, 7
        %v843 = vsub.s32 1, %v842
        %v844 = vrot.slane %v363, %v843
        %v845 = vmul.f32 %v835, %v840
        %v846 = vmul.f32 %v833, %v844
        %v847 = vmul.f32 %v836, %v840
        %v848 = vmul.f32 %v834, %v844
        %849 = vst [vmem:[#allocation3 + $0x20] sm:$0xff] %v845
        %850 = vst [vmem:[#allocation3 + $0x28] sm:$0xff] %v846
        %851 = vst [vmem:[#allocation3 + $0x30] sm:$0xff] %v847
        %852 = vst [vmem:[#allocation3 + $0x38] sm:$0xff] %v848
        %853 = vrot.lane.b32.xlu0 %v793, 15
        %v854 = vpop.permute.xlu0 %853
        %855 = vrot.lane.b32.xlu0 %v795, 15
        %v856 = vpop.permute.xlu0 %855
        %857 = vrot.lane.b32.xlu0 %v794, 15
        %v858 = vpop.permute.xlu0 %857
        %859 = vrot.lane.b32.xlu0 %v796, 15
        %v860 = vpop.permute.xlu0 %859
        %v861 = vsel %vm452, %v854, %v858
        %v862 = vsel %vm452, %v856, %v860
        %v863 = vsel %vm452, %v858, %v854
        %v864 = vsel %vm452, %v860, %v856
        %v865 = vlaneseq
        %v866 = vshrl.u32 %v865, 7
        %v867 = vsub.s32 2, %v866
        %v868 = vrot.slane %v362, %v867
        %v869 = vlaneseq
        %v870 = vshrl.u32 %v869, 7
        %v871 = vsub.s32 2, %v870
        %v872 = vrot.slane %v363, %v871
        %v873 = vmul.f32 %v863, %v868
        %v874 = vmul.f32 %v861, %v872
        %v875 = vmul.f32 %v864, %v868
        %v876 = vmul.f32 %v862, %v872
        %877 = vst [vmem:[#allocation3 + $0x40] sm:$0xff] %v873
        %878 = vst [vmem:[#allocation3 + $0x48] sm:$0xff] %v874
        %879 = vst [vmem:[#allocation3 + $0x50] sm:$0xff] %v875
        %880 = vst [vmem:[#allocation3 + $0x58] sm:$0xff] %v876
        %881 = vrot.lane.b32.xlu0 %v793, 1
        %v882 = vpop.permute.xlu0 %881
        %883 = vrot.lane.b32.xlu0 %v795, 1
        %v884 = vpop.permute.xlu0 %883
        %885 = vrot.lane.b32.xlu0 %v794, 1
        %v886 = vpop.permute.xlu0 %885
        %887 = vrot.lane.b32.xlu0 %v796, 1
        %v888 = vpop.permute.xlu0 %887
        %v889 = vsel %vm486, %v882, %v886
        %v890 = vsel %vm486, %v884, %v888
        %v891 = vsel %vm486, %v886, %v882
        %v892 = vsel %vm486, %v888, %v884
        %v893 = vlaneseq
        %v894 = vshrl.u32 %v893, 7
        %v895 = vsub.s32 3, %v894
        %v896 = vrot.slane %v362, %v895
        %v897 = vlaneseq
        %v898 = vshrl.u32 %v897, 7
        %v899 = vsub.s32 3, %v898
        %v900 = vrot.slane %v363, %v899
        %v901 = vmul.f32 %v891, %v896
        %v902 = vmul.f32 %v889, %v900
        %v903 = vmul.f32 %v892, %v896
        %v904 = vmul.f32 %v890, %v900
        %905 = vst [vmem:[#allocation3 + $0x60] sm:$0xff] %v901
        %906 = vst [vmem:[#allocation3 + $0x68] sm:$0xff] %v902
        %907 = vst [vmem:[#allocation3 + $0x70] sm:$0xff] %v903
        %908 = vst [vmem:[#allocation3 + $0x78] sm:$0xff] %v904
        %v909 = vlaneseq
        %v910 = vshrl.u32 %v909, 7
        %v911 = vsub.s32 4, %v910
        %v912 = vrot.slane %v362, %v911
        %v913 = vlaneseq
        %v914 = vshrl.u32 %v913, 7
        %v915 = vsub.s32 4, %v914
        %v916 = vrot.slane %v363, %v915
        %v917 = vmul.f32 %v793, %v912
        %v918 = vmul.f32 %v794, %v916
        %v919 = vmul.f32 %v795, %v912
        %v920 = vmul.f32 %v796, %v916
        %921 = vst [vmem:[#allocation3 + $0x80] sm:$0xff] %v917
        %922 = vst [vmem:[#allocation3 + $0x88] sm:$0xff] %v918
        %923 = vst [vmem:[#allocation3 + $0x90] sm:$0xff] %v919
        %924 = vst [vmem:[#allocation3 + $0x98] sm:$0xff] %v920
        %925 = vrot.lane.b32.xlu0 %v793, 127
        %v926 = vpop.permute.xlu0 %925
        %927 = vrot.lane.b32.xlu0 %v795, 127
        %v928 = vpop.permute.xlu0 %927
        %929 = vrot.lane.b32.xlu0 %v794, 127
        %v930 = vpop.permute.xlu0 %929
        %931 = vrot.lane.b32.xlu0 %v796, 127
        %v932 = vpop.permute.xlu0 %931
        %v933 = vsel %vm540, %v926, %v930
        %v934 = vsel %vm540, %v928, %v932
        %v935 = vsel %vm540, %v930, %v926
        %v936 = vsel %vm540, %v932, %v928
        %v937 = vlaneseq
        %v938 = vshrl.u32 %v937, 7
        %v939 = vsub.s32 5, %v938
        %v940 = vrot.slane %v362, %v939
        %v941 = vlaneseq
        %v942 = vshrl.u32 %v941, 7
        %v943 = vsub.s32 5, %v942
        %v944 = vrot.slane %v363, %v943
        %v945 = vmul.f32 %v933, %v940
        %v946 = vmul.f32 %v935, %v944
        %v947 = vmul.f32 %v934, %v940
        %v948 = vmul.f32 %v936, %v944
        %949 = vst [vmem:[#allocation3 + $0xa0] sm:$0xff] %v945
        %950 = vst [vmem:[#allocation3 + $0xa8] sm:$0xff] %v946
        %951 = vst [vmem:[#allocation3 + $0xb0] sm:$0xff] %v947
        %952 = vst [vmem:[#allocation3 + $0xb8] sm:$0xff] %v948
        %953 = vrot.lane.b32.xlu0 %v793, 113
        %v954 = vpop.permute.xlu0 %953
        %955 = vrot.lane.b32.xlu0 %v795, 113
        %v956 = vpop.permute.xlu0 %955
        %957 = vrot.lane.b32.xlu0 %v794, 113
        %v958 = vpop.permute.xlu0 %957
        %959 = vrot.lane.b32.xlu0 %v796, 113
        %v960 = vpop.permute.xlu0 %959
        %v961 = vsel %vm574, %v954, %v958
        %v962 = vsel %vm574, %v956, %v960
        %v963 = vsel %vm574, %v958, %v954
        %v964 = vsel %vm574, %v960, %v956
        %v965 = vlaneseq
        %v966 = vshrl.u32 %v965, 7
        %v967 = vsub.s32 6, %v966
        %v968 = vrot.slane %v362, %v967
        %v969 = vlaneseq
        %v970 = vshrl.u32 %v969, 7
        %v971 = vsub.s32 6, %v970
        %v972 = vrot.slane %v363, %v971
        %v973 = vmul.f32 %v961, %v968
        %v974 = vmul.f32 %v963, %v972
        %v975 = vmul.f32 %v962, %v968
        %v976 = vmul.f32 %v964, %v972
        %977 = vst [vmem:[#allocation3 + $0xc0] sm:$0xff] %v973
        %978 = vst [vmem:[#allocation3 + $0xc8] sm:$0xff] %v974
        %979 = vst [vmem:[#allocation3 + $0xd0] sm:$0xff] %v975
        %980 = vst [vmem:[#allocation3 + $0xd8] sm:$0xff] %v976
        %981 = vrot.lane.b32.xlu0 %v793, 112
        %v982 = vpop.permute.xlu0 %981
        %983 = vrot.lane.b32.xlu0 %v795, 112
        %v984 = vpop.permute.xlu0 %983
        %985 = vrot.lane.b32.xlu0 %v794, 112
        %v986 = vpop.permute.xlu0 %985
        %987 = vrot.lane.b32.xlu0 %v796, 112
        %v988 = vpop.permute.xlu0 %987
        %v989 = vsel %vm608, %v982, %v986
        %v990 = vsel %vm608, %v984, %v988
        %v991 = vsel %vm608, %v986, %v982
        %v992 = vsel %vm608, %v988, %v984
        %v993 = vlaneseq
        %v994 = vshrl.u32 %v993, 7
        %v995 = vsub.s32 7, %v994
        %v996 = vrot.slane %v362, %v995
        %v997 = vlaneseq
        %v998 = vshrl.u32 %v997, 7
        %v999 = vsub.s32 7, %v998
        %v1000 = vrot.slane %v363, %v999
        %v1001 = vmul.f32 %v989, %v996
        %v1002 = vmul.f32 %v991, %v1000
        %v1003 = vmul.f32 %v990, %v996
        %v1004 = vmul.f32 %v992, %v1000
        %1005 = vst [vmem:[#allocation3 + $0xe0] sm:$0xff] %v1001
        %1006 = vst [vmem:[#allocation3 + $0xe8] sm:$0xff] %v1002
        %1007 = vst [vmem:[#allocation3 + $0xf0] sm:$0xff] %v1003
        %1008 = vst [vmem:[#allocation3 + $0xf8] sm:$0xff] %v1004
        %1009 = vrot.lane.b32.xlu0 %v793, 111
        %v1010 = vpop.permute.xlu0 %1009
        %1011 = vrot.lane.b32.xlu0 %v795, 111
        %v1012 = vpop.permute.xlu0 %1011
        %1013 = vrot.lane.b32.xlu0 %v794, 111
        %v1014 = vpop.permute.xlu0 %1013
        %1015 = vrot.lane.b32.xlu0 %v796, 111
        %v1016 = vpop.permute.xlu0 %1015
        %v1017 = vsel %vm642, %v1010, %v1014
        %v1018 = vsel %vm642, %v1012, %v1016
        %v1019 = vsel %vm642, %v1014, %v1010
        %v1020 = vsel %vm642, %v1016, %v1012
        %v1021 = vlaneseq
        %v1022 = vshrl.u32 %v1021, 7
        %v1023 = vsub.s32 0, %v1022
        %v1024 = vrot.slane %v364, %v1023
        %v1025 = vlaneseq
        %v1026 = vshrl.u32 %v1025, 7
        %v1027 = vsub.s32 0, %v1026
        %v1028 = vrot.slane %v365, %v1027
        %v1029 = vmul.f32 %v1017, %v1024
        %v1030 = vmul.f32 %v1019, %v1028
        %v1031 = vmul.f32 %v1018, %v1024
        %v1032 = vmul.f32 %v1020, %v1028
        %1033 = vst [vmem:[#allocation3 + $0x100] sm:$0xff] %v1029
        %1034 = vst [vmem:[#allocation3 + $0x108] sm:$0xff] %v1030
        %1035 = vst [vmem:[#allocation3 + $0x110] sm:$0xff] %v1031
        %1036 = vst [vmem:[#allocation3 + $0x118] sm:$0xff] %v1032
        %v1037 = vld [vmem:[%s6] sm:$0xff]
        %v1038 = vld [vmem:[%s6 + $0x8] sm:$0xff]
        %v1039 = vld [vmem:[%s6 + $0x10] sm:$0xff]
        %v1040 = vld [vmem:[%s6 + $0x18] sm:$0xff]
        %v1041 = vld [vmem:[%s6 + $0x20] sm:$0xff]
        %v1042 = vld [vmem:[%s6 + $0x28] sm:$0xff]
        %v1043 = vld [vmem:[%s6 + $0x30] sm:$0xff]
        %v1044 = vld [vmem:[%s6 + $0x38] sm:$0xff]
        %v1045 = vld [vmem:[#allocation3] sm:$0xff]
        %v1046 = vld [vmem:[#allocation3 + $0x8] sm:$0xff]
        %v1047 = vld [vmem:[#allocation3 + $0x10] sm:$0xff]
        %v1048 = vld [vmem:[#allocation3 + $0x18] sm:$0xff]
        %v1049 = vld [vmem:[#allocation3 + $0x20] sm:$0xff]
        %v1050 = vld [vmem:[#allocation3 + $0x28] sm:$0xff]
        %v1051 = vld [vmem:[#allocation3 + $0x30] sm:$0xff]
        %v1052 = vld [vmem:[#allocation3 + $0x38] sm:$0xff]
        %v1053 = vld [vmem:[#allocation3 + $0x40] sm:$0xff]
        %v1054 = vld [vmem:[#allocation3 + $0x48] sm:$0xff]
        %v1055 = vld [vmem:[#allocation3 + $0x50] sm:$0xff]
        %v1056 = vld [vmem:[#allocation3 + $0x58] sm:$0xff]
        %v1057 = vld [vmem:[#allocation3 + $0x60] sm:$0xff]
        %v1058 = vld [vmem:[#allocation3 + $0x68] sm:$0xff]
        %v1059 = vld [vmem:[#allocation3 + $0x70] sm:$0xff]
        %v1060 = vld [vmem:[#allocation3 + $0x78] sm:$0xff]
        %v1061 = vld [vmem:[#allocation3 + $0x80] sm:$0xff]
        %v1062 = vld [vmem:[#allocation3 + $0x88] sm:$0xff]
        %v1063 = vld [vmem:[#allocation3 + $0x90] sm:$0xff]
        %v1064 = vld [vmem:[#allocation3 + $0x98] sm:$0xff]
        %v1065 = vld [vmem:[#allocation3 + $0xa0] sm:$0xff]
        %v1066 = vld [vmem:[#allocation3 + $0xa8] sm:$0xff]
        %v1067 = vld [vmem:[#allocation3 + $0xb0] sm:$0xff]
        %v1068 = vld [vmem:[#allocation3 + $0xb8] sm:$0xff]
        %v1069 = vld [vmem:[#allocation3 + $0xc0] sm:$0xff]
        %v1070 = vld [vmem:[#allocation3 + $0xc8] sm:$0xff]
        %v1071 = vld [vmem:[#allocation3 + $0xd0] sm:$0xff]
        %v1072 = vld [vmem:[#allocation3 + $0xd8] sm:$0xff]
        %v1073 = vld [vmem:[#allocation3 + $0xe0] sm:$0xff]
        %v1074 = vld [vmem:[#allocation3 + $0xe8] sm:$0xff]
        %v1075 = vld [vmem:[#allocation3 + $0xf0] sm:$0xff]
        %v1076 = vld [vmem:[#allocation3 + $0xf8] sm:$0xff]
        %v1077 = vld [vmem:[#allocation3 + $0x100] sm:$0xff]
        %v1078 = vld [vmem:[#allocation3 + $0x108] sm:$0xff]
        %v1079 = vld [vmem:[#allocation3 + $0x110] sm:$0xff]
        %v1080 = vld [vmem:[#allocation3 + $0x118] sm:$0xff]
        %v1081 = vld [vmem:[%s7] sm:$0xff]
        %v1082 = vld [vmem:[%s7 + $0x8] sm:$0xff]
        %v1083 = vld [vmem:[%s7 + $0x10] sm:$0xff]
        %v1084 = vld [vmem:[%s7 + $0x18] sm:$0xff]
        %1086 = vset.pattern.permute.xlu0 0
        %1087 = vperm.xlu0 %1086, %v1081
        %v1088 = vpop.permute.xlu0 %1087
        %1091 = vset.pattern.permute.xlu0 0
        %1092 = vperm.xlu0 %1091, %v1082
        %v1093 = vpop.permute.xlu0 %1092
        %1096 = vset.pattern.permute.xlu0 0
        %1097 = vperm.xlu0 %1096, %v1083
        %v1098 = vpop.permute.xlu0 %1097
        %1101 = vset.pattern.permute.xlu0 0
        %1102 = vperm.xlu0 %1101, %v1084
        %v1103 = vpop.permute.xlu0 %1102
        %vm1105 = vcmask 130048
        %v1107 = vsel %vm1105, %v1038, 0
        %v1110 = vsel %vm1105, %v1040, 0
        %v1113 = vsel %vm1105, %v1042, 0
        %v1116 = vsel %vm1105, %v1044, 0
        %1118 = vmatprep.subr.mxu0 %v1076
        %1119 = vmatpush1.msra.mxu0 %v1075
        %1120 = vmatprep.subr.mxu0 %v1074
        %1121 = vmatpush1.msra.mxu0 %v1073
        %1122 = vmatprep.subr.mxu0 %v1072
        %1123 = vmatpush1.msra.mxu0 %v1071
        %1124 = vmatprep.subr.mxu0 %v1070
        %1125 = vmatpush1.msra.mxu0 %v1069
        %1126 = vmatprep.subr.mxu0 %v1068
        %1127 = vmatpush1.msra.mxu0 %v1067
        %1128 = vmatprep.subr.mxu0 %v1066
        %1129 = vmatpush1.msra.mxu0 %v1065
        %1130 = vmatprep.subr.mxu0 %v1064
        %1131 = vmatpush1.msra.mxu0 %v1063
        %1132 = vmatprep.subr.mxu0 %v1062
        %1133 = vmatpush1.msra.mxu0 %v1061
        %1134 = vmatprep.subr.mxu0 %v1060
        %1135 = vmatpush1.msra.mxu0 %v1059
        %1136 = vmatprep.subr.mxu0 %v1058
        %1137 = vmatpush1.msra.mxu0 %v1057
        %1138 = vmatprep.subr.mxu0 %v1056
        %1139 = vmatpush1.msra.mxu0 %v1055
        %1140 = vmatprep.subr.mxu0 %v1054
        %1141 = vmatpush1.msra.mxu0 %v1053
        %1142 = vmatprep.subr.mxu0 %v1052
        %1143 = vmatpush1.msra.mxu0 %v1051
        %1144 = vmatprep.subr.mxu0 %v1050
        %1145 = vmatpush1.msra.mxu0 %v1049
        %1146 = vmatprep.subr.mxu0 %v1048
        %1147 = vmatpush1.msra.mxu0 %v1047
        %1148 = vmatprep.subr.mxu0 %v1046
        %1149 = vmatpush1.msra.mxu0 %v1045
        %1150 = vmatprep.subr.mxu0 0.0
        %1151 = vmatpush2.msra.mxu0 0.0
        %1152 = vmatprep.subr.mxu0 0.0
        %1153 = vmatpush2.msra.mxu0 0.0
        %1154 = vmatprep.subr.mxu0 0.0
        %1155 = vmatpush2.msra.mxu0 0.0
        %1156 = vmatprep.subr.mxu0 0.0
        %1157 = vmatpush2.msra.mxu0 0.0
        %1158 = vmatprep.subr.mxu0 0.0
        %1159 = vmatpush2.msra.mxu0 0.0
        %1160 = vmatprep.subr.mxu0 0.0
        %1161 = vmatpush2.msra.mxu0 0.0
        %1162 = vmatprep.subr.mxu0 0.0
        %1163 = vmatpush2.msra.mxu0 0.0
        %1164 = vmatprep.subr.mxu0 0.0
        %1165 = vmatpush2.msra.mxu0 0.0
        %1166 = vmatprep.subr.mxu0 0.0
        %1167 = vmatpush2.msra.mxu0 0.0
        %1168 = vmatprep.subr.mxu0 0.0
        %1169 = vmatpush2.msra.mxu0 0.0
        %1170 = vmatprep.subr.mxu0 0.0
        %1171 = vmatpush2.msra.mxu0 0.0
        %1172 = vmatprep.subr.mxu0 0.0
        %1173 = vmatpush2.msra.mxu0 0.0
        %1174 = vmatprep.subr.mxu0 0.0
        %1175 = vmatpush2.msra.mxu0 0.0
        %1176 = vmatprep.subr.mxu0 0.0
        %1177 = vmatpush2.msra.mxu0 0.0
        %1178 = vmatprep.subr.mxu0 %v1080
        %1179 = vmatpush2.msra.mxu0 %v1079
        %1180 = vmatprep.subr.mxu0 %v1078
        %1181 = vmatpush2.msra.mxu0 %v1077
        %1182 = vmatprep.mubr.f32.mxu0 %v1107
        %1183 = vmatmul.mubr.f32.gmra.mxu0 %v1037
        %v1184 = vpop.f32.mrf.mxu0
        %v1185 = vadd.f32 %v1088, %v1184
        %v1186 = vpop.f32.mrf.mxu0
        %v1187 = vadd.f32 %v1088, %v1186
        %1188 = vmatprep.mubr.f32.mxu0 %v1110
        %1189 = vmatmul.mubr.f32.gmra.mxu0 %v1039
        %v1190 = vpop.f32.mrf.mxu0
        %v1191 = vadd.f32 %v1093, %v1190
        %v1192 = vpop.f32.mrf.mxu0
        %v1193 = vadd.f32 %v1093, %v1192
        %1194 = vmatprep.mubr.f32.mxu0 %v1113
        %1195 = vmatmul.mubr.f32.gmra.mxu0 %v1041
        %v1196 = vpop.f32.mrf.mxu0
        %v1197 = vadd.f32 %v1098, %v1196
        %v1198 = vpop.f32.mrf.mxu0
        %v1199 = vadd.f32 %v1098, %v1198
        %1200 = vmatprep.mubr.f32.mxu0 %v1116
        %1201 = vmatmul.mubr.f32.gmra.mxu0 %v1043
        %v1202 = vpop.f32.mrf.mxu0
        %v1203 = vadd.f32 %v1103, %v1202
        %v1204 = vpop.f32.mrf.mxu0
        %v1205 = vadd.f32 %v1103, %v1204
        %1206 = vdwg.mxu0
        %v1207 = vmax.f32 %v1185, 0.0
        %v1208 = vmax.f32 %v1187, 0.0
        %v1209 = vmax.f32 %v1191, 0.0
        %v1210 = vmax.f32 %v1193, 0.0
        %v1211 = vmax.f32 %v1197, 0.0
        %v1212 = vmax.f32 %v1199, 0.0
        %v1213 = vmax.f32 %v1203, 0.0
        %v1214 = vmax.f32 %v1205, 0.0
        %1215 = vrot.lane.b32.xlu0 %v1207, 17
        %v1216 = vpop.permute.xlu0 %1215
        %1217 = vrot.lane.b32.xlu0 %v1209, 17
        %v1218 = vpop.permute.xlu0 %1217
        %1219 = vrot.lane.b32.xlu0 %v1211, 17
        %v1220 = vpop.permute.xlu0 %1219
        %1221 = vrot.lane.b32.xlu0 %v1213, 17
        %v1222 = vpop.permute.xlu0 %1221
        %1223 = vrot.lane.b32.xlu0 %v1208, 17
        %v1224 = vpop.permute.xlu0 %1223
        %1225 = vrot.lane.b32.xlu0 %v1210, 17
        %v1226 = vpop.permute.xlu0 %1225
        %1227 = vrot.lane.b32.xlu0 %v1212, 17
        %v1228 = vpop.permute.xlu0 %1227
        %1229 = vrot.lane.b32.xlu0 %v1214, 17
        %v1230 = vpop.permute.xlu0 %1229
        %v1231 = vsel %vm383, %v1216, %v1224
        %v1232 = vsel %vm383, %v1218, %v1226
        %v1233 = vsel %vm383, %v1220, %v1228
        %v1234 = vsel %vm383, %v1222, %v1230
        %v1235 = vsel %vm383, %v1224, %v1216
        %v1236 = vsel %vm383, %v1226, %v1218
        %v1237 = vsel %vm383, %v1228, %v1220
        %v1238 = vsel %vm383, %v1230, %v1222
        %v1239 = vmul.f32 %v1235, %v812
        %v1240 = vmul.f32 %v1231, %v816
        %v1241 = vmul.f32 %v1236, %v812
        %v1242 = vmul.f32 %v1232, %v816
        %v1243 = vmul.f32 %v1237, %v812
        %v1244 = vmul.f32 %v1233, %v816
        %v1245 = vmul.f32 %v1238, %v812
        %v1246 = vmul.f32 %v1234, %v816
        %1247 = vst [vmem:[#allocation4] sm:$0xff] %v1239
        %1248 = vst [vmem:[#allocation4 + $0x8] sm:$0xff] %v1240
        %1249 = vst [vmem:[#allocation4 + $0x10] sm:$0xff] %v1241
        %1250 = vst [vmem:[#allocation4 + $0x18] sm:$0xff] %v1242
        %1251 = vst [vmem:[#allocation4 + $0x20] sm:$0xff] %v1243
        %1252 = vst [vmem:[#allocation4 + $0x28] sm:$0xff] %v1244
        %1253 = vst [vmem:[#allocation4 + $0x30] sm:$0xff] %v1245
        %1254 = vst [vmem:[#allocation4 + $0x38] sm:$0xff] %v1246
        %1255 = vrot.lane.b32.xlu0 %v1207, 16
        %v1256 = vpop.permute.xlu0 %1255
        %1257 = vrot.lane.b32.xlu0 %v1209, 16
        %v1258 = vpop.permute.xlu0 %1257
        %1259 = vrot.lane.b32.xlu0 %v1211, 16
        %v1260 = vpop.permute.xlu0 %1259
        %1261 = vrot.lane.b32.xlu0 %v1213, 16
        %v1262 = vpop.permute.xlu0 %1261
        %1263 = vrot.lane.b32.xlu0 %v1208, 16
        %v1264 = vpop.permute.xlu0 %1263
        %1265 = vrot.lane.b32.xlu0 %v1210, 16
        %v1266 = vpop.permute.xlu0 %1265
        %1267 = vrot.lane.b32.xlu0 %v1212, 16
        %v1268 = vpop.permute.xlu0 %1267
        %1269 = vrot.lane.b32.xlu0 %v1214, 16
        %v1270 = vpop.permute.xlu0 %1269
        %v1271 = vsel %vm416, %v1256, %v1264
        %v1272 = vsel %vm416, %v1258, %v1266
        %v1273 = vsel %vm416, %v1260, %v1268
        %v1274 = vsel %vm416, %v1262, %v1270
        %v1275 = vsel %vm416, %v1264, %v1256
        %v1276 = vsel %vm416, %v1266, %v1258
        %v1277 = vsel %vm416, %v1268, %v1260
        %v1278 = vsel %vm416, %v1270, %v1262
        %v1279 = vmul.f32 %v1275, %v840
        %v1280 = vmul.f32 %v1271, %v844
        %v1281 = vmul.f32 %v1276, %v840
        %v1282 = vmul.f32 %v1272, %v844
        %v1283 = vmul.f32 %v1277, %v840
        %v1284 = vmul.f32 %v1273, %v844
        %v1285 = vmul.f32 %v1278, %v840
        %v1286 = vmul.f32 %v1274, %v844
        %1287 = vst [vmem:[#allocation4 + $0x40] sm:$0xff] %v1279
        %1288 = vst [vmem:[#allocation4 + $0x48] sm:$0xff] %v1280
        %1289 = vst [vmem:[#allocation4 + $0x50] sm:$0xff] %v1281
        %1290 = vst [vmem:[#allocation4 + $0x58] sm:$0xff] %v1282
        %1291 = vst [vmem:[#allocation4 + $0x60] sm:$0xff] %v1283
        %1292 = vst [vmem:[#allocation4 + $0x68] sm:$0xff] %v1284
        %1293 = vst [vmem:[#allocation4 + $0x70] sm:$0xff] %v1285
        %1294 = vst [vmem:[#allocation4 + $0x78] sm:$0xff] %v1286
        %1295 = vrot.lane.b32.xlu0 %v1207, 15
        %v1296 = vpop.permute.xlu0 %1295
        %1297 = vrot.lane.b32.xlu0 %v1209, 15
        %v1298 = vpop.permute.xlu0 %1297
        %1299 = vrot.lane.b32.xlu0 %v1211, 15
        %v1300 = vpop.permute.xlu0 %1299
        %1301 = vrot.lane.b32.xlu0 %v1213, 15
        %v1302 = vpop.permute.xlu0 %1301
        %1303 = vrot.lane.b32.xlu0 %v1208, 15
        %v1304 = vpop.permute.xlu0 %1303
        %1305 = vrot.lane.b32.xlu0 %v1210, 15
        %v1306 = vpop.permute.xlu0 %1305
        %1307 = vrot.lane.b32.xlu0 %v1212, 15
        %v1308 = vpop.permute.xlu0 %1307
        %1309 = vrot.lane.b32.xlu0 %v1214, 15
        %v1310 = vpop.permute.xlu0 %1309
        %v1311 = vsel %vm452, %v1296, %v1304
        %v1312 = vsel %vm452, %v1298, %v1306
        %v1313 = vsel %vm452, %v1300, %v1308
        %v1314 = vsel %vm452, %v1302, %v1310
        %v1315 = vsel %vm452, %v1304, %v1296
        %v1316 = vsel %vm452, %v1306, %v1298
        %v1317 = vsel %vm452, %v1308, %v1300
        %v1318 = vsel %vm452, %v1310, %v1302
        %v1319 = vmul.f32 %v1315, %v868
        %v1320 = vmul.f32 %v1311, %v872
        %v1321 = vmul.f32 %v1316, %v868
        %v1322 = vmul.f32 %v1312, %v872
        %v1323 = vmul.f32 %v1317, %v868
        %v1324 = vmul.f32 %v1313, %v872
        %v1325 = vmul.f32 %v1318, %v868
        %v1326 = vmul.f32 %v1314, %v872
        %1327 = vst [vmem:[#allocation4 + $0x80] sm:$0xff] %v1319
        %1328 = vst [vmem:[#allocation4 + $0x88] sm:$0xff] %v1320
        %1329 = vst [vmem:[#allocation4 + $0x90] sm:$0xff] %v1321
        %1330 = vst [vmem:[#allocation4 + $0x98] sm:$0xff] %v1322
        %1331 = vst [vmem:[#allocation4 + $0xa0] sm:$0xff] %v1323
        %1332 = vst [vmem:[#allocation4 + $0xa8] sm:$0xff] %v1324
        %1333 = vst [vmem:[#allocation4 + $0xb0] sm:$0xff] %v1325
        %1334 = vst [vmem:[#allocation4 + $0xb8] sm:$0xff] %v1326
        %1335 = vrot.lane.b32.xlu0 %v1207, 1
        %v1336 = vpop.permute.xlu0 %1335
        %1337 = vrot.lane.b32.xlu0 %v1209, 1
        %v1338 = vpop.permute.xlu0 %1337
        %1339 = vrot.lane.b32.xlu0 %v1211, 1
        %v1340 = vpop.permute.xlu0 %1339
        %1341 = vrot.lane.b32.xlu0 %v1213, 1
        %v1342 = vpop.permute.xlu0 %1341
        %1343 = vrot.lane.b32.xlu0 %v1208, 1
        %v1344 = vpop.permute.xlu0 %1343
        %1345 = vrot.lane.b32.xlu0 %v1210, 1
        %v1346 = vpop.permute.xlu0 %1345
        %1347 = vrot.lane.b32.xlu0 %v1212, 1
        %v1348 = vpop.permute.xlu0 %1347
        %1349 = vrot.lane.b32.xlu0 %v1214, 1
        %v1350 = vpop.permute.xlu0 %1349
        %v1351 = vsel %vm486, %v1336, %v1344
        %v1352 = vsel %vm486, %v1338, %v1346
        %v1353 = vsel %vm486, %v1340, %v1348
        %v1354 = vsel %vm486, %v1342, %v1350
        %v1355 = vsel %vm486, %v1344, %v1336
        %v1356 = vsel %vm486, %v1346, %v1338
        %v1357 = vsel %vm486, %v1348, %v1340
        %v1358 = vsel %vm486, %v1350, %v1342
        %v1359 = vmul.f32 %v1355, %v896
        %v1360 = vmul.f32 %v1351, %v900
        %v1361 = vmul.f32 %v1356, %v896
        %v1362 = vmul.f32 %v1352, %v900
        %v1363 = vmul.f32 %v1357, %v896
        %v1364 = vmul.f32 %v1353, %v900
        %v1365 = vmul.f32 %v1358, %v896
        %v1366 = vmul.f32 %v1354, %v900
        %1367 = vst [vmem:[#allocation4 + $0xc0] sm:$0xff] %v1359
        %1368 = vst [vmem:[#allocation4 + $0xc8] sm:$0xff] %v1360
        %1369 = vst [vmem:[#allocation4 + $0xd0] sm:$0xff] %v1361
        %1370 = vst [vmem:[#allocation4 + $0xd8] sm:$0xff] %v1362
        %1371 = vst [vmem:[#allocation4 + $0xe0] sm:$0xff] %v1363
        %1372 = vst [vmem:[#allocation4 + $0xe8] sm:$0xff] %v1364
        %1373 = vst [vmem:[#allocation4 + $0xf0] sm:$0xff] %v1365
        %1374 = vst [vmem:[#allocation4 + $0xf8] sm:$0xff] %v1366
        %v1375 = vmul.f32 %v1207, %v912
        %v1376 = vmul.f32 %v1208, %v916
        %v1377 = vmul.f32 %v1209, %v912
        %v1378 = vmul.f32 %v1210, %v916
        %v1379 = vmul.f32 %v1211, %v912
        %v1380 = vmul.f32 %v1212, %v916
        %v1381 = vmul.f32 %v1213, %v912
        %v1382 = vmul.f32 %v1214, %v916
        %1383 = vst [vmem:[#allocation4 + $0x100] sm:$0xff] %v1375
        %1384 = vst [vmem:[#allocation4 + $0x108] sm:$0xff] %v1376
        %1385 = vst [vmem:[#allocation4 + $0x110] sm:$0xff] %v1377
        %1386 = vst [vmem:[#allocation4 + $0x118] sm:$0xff] %v1378
        %1387 = vst [vmem:[#allocation4 + $0x120] sm:$0xff] %v1379
        %1388 = vst [vmem:[#allocation4 + $0x128] sm:$0xff] %v1380
        %1389 = vst [vmem:[#allocation4 + $0x130] sm:$0xff] %v1381
        %1390 = vst [vmem:[#allocation4 + $0x138] sm:$0xff] %v1382
        %1391 = vrot.lane.b32.xlu0 %v1207, 127
        %v1392 = vpop.permute.xlu0 %1391
        %1393 = vrot.lane.b32.xlu0 %v1209, 127
        %v1394 = vpop.permute.xlu0 %1393
        %1395 = vrot.lane.b32.xlu0 %v1211, 127
        %v1396 = vpop.permute.xlu0 %1395
        %1397 = vrot.lane.b32.xlu0 %v1213, 127
        %v1398 = vpop.permute.xlu0 %1397
        %1399 = vrot.lane.b32.xlu0 %v1208, 127
        %v1400 = vpop.permute.xlu0 %1399
        %1401 = vrot.lane.b32.xlu0 %v1210, 127
        %v1402 = vpop.permute.xlu0 %1401
        %1403 = vrot.lane.b32.xlu0 %v1212, 127
        %v1404 = vpop.permute.xlu0 %1403
        %1405 = vrot.lane.b32.xlu0 %v1214, 127
        %v1406 = vpop.permute.xlu0 %1405
        %v1407 = vsel %vm540, %v1392, %v1400
        %v1408 = vsel %vm540, %v1394, %v1402
        %v1409 = vsel %vm540, %v1396, %v1404
        %v1410 = vsel %vm540, %v1398, %v1406
        %v1411 = vsel %vm540, %v1400, %v1392
        %v1412 = vsel %vm540, %v1402, %v1394
        %v1413 = vsel %vm540, %v1404, %v1396
        %v1414 = vsel %vm540, %v1406, %v1398
        %v1415 = vmul.f32 %v1407, %v940
        %v1416 = vmul.f32 %v1411, %v944
        %v1417 = vmul.f32 %v1408, %v940
        %v1418 = vmul.f32 %v1412, %v944
        %v1419 = vmul.f32 %v1409, %v940
        %v1420 = vmul.f32 %v1413, %v944
        %v1421 = vmul.f32 %v1410, %v940
        %v1422 = vmul.f32 %v1414, %v944
        %1423 = vst [vmem:[#allocation4 + $0x140] sm:$0xff] %v1415
        %1424 = vst [vmem:[#allocation4 + $0x148] sm:$0xff] %v1416
        %1425 = vst [vmem:[#allocation4 + $0x150] sm:$0xff] %v1417
        %1426 = vst [vmem:[#allocation4 + $0x158] sm:$0xff] %v1418
        %1427 = vst [vmem:[#allocation4 + $0x160] sm:$0xff] %v1419
        %1428 = vst [vmem:[#allocation4 + $0x168] sm:$0xff] %v1420
        %1429 = vst [vmem:[#allocation4 + $0x170] sm:$0xff] %v1421
        %1430 = vst [vmem:[#allocation4 + $0x178] sm:$0xff] %v1422
        %1431 = vrot.lane.b32.xlu0 %v1207, 113
        %v1432 = vpop.permute.xlu0 %1431
        %1433 = vrot.lane.b32.xlu0 %v1209, 113
        %v1434 = vpop.permute.xlu0 %1433
        %1435 = vrot.lane.b32.xlu0 %v1211, 113
        %v1436 = vpop.permute.xlu0 %1435
        %1437 = vrot.lane.b32.xlu0 %v1213, 113
        %v1438 = vpop.permute.xlu0 %1437
        %1439 = vrot.lane.b32.xlu0 %v1208, 113
        %v1440 = vpop.permute.xlu0 %1439
        %1441 = vrot.lane.b32.xlu0 %v1210, 113
        %v1442 = vpop.permute.xlu0 %1441
        %1443 = vrot.lane.b32.xlu0 %v1212, 113
        %v1444 = vpop.permute.xlu0 %1443
        %1445 = vrot.lane.b32.xlu0 %v1214, 113
        %v1446 = vpop.permute.xlu0 %1445
        %v1447 = vsel %vm574, %v1432, %v1440
        %v1448 = vsel %vm574, %v1434, %v1442
        %v1449 = vsel %vm574, %v1436, %v1444
        %v1450 = vsel %vm574, %v1438, %v1446
        %v1451 = vsel %vm574, %v1440, %v1432
        %v1452 = vsel %vm574, %v1442, %v1434
        %v1453 = vsel %vm574, %v1444, %v1436
        %v1454 = vsel %vm574, %v1446, %v1438
        %v1455 = vmul.f32 %v1447, %v968
        %v1456 = vmul.f32 %v1451, %v972
        %v1457 = vmul.f32 %v1448, %v968
        %v1458 = vmul.f32 %v1452, %v972
        %v1459 = vmul.f32 %v1449, %v968
        %v1460 = vmul.f32 %v1453, %v972
        %v1461 = vmul.f32 %v1450, %v968
        %v1462 = vmul.f32 %v1454, %v972
        %1463 = vst [vmem:[#allocation4 + $0x180] sm:$0xff] %v1455
        %1464 = vst [vmem:[#allocation4 + $0x188] sm:$0xff] %v1456
        %1465 = vst [vmem:[#allocation4 + $0x190] sm:$0xff] %v1457
        %1466 = vst [vmem:[#allocation4 + $0x198] sm:$0xff] %v1458
        %1467 = vst [vmem:[#allocation4 + $0x1a0] sm:$0xff] %v1459
        %1468 = vst [vmem:[#allocation4 + $0x1a8] sm:$0xff] %v1460
        %1469 = vst [vmem:[#allocation4 + $0x1b0] sm:$0xff] %v1461
        %1470 = vst [vmem:[#allocation4 + $0x1b8] sm:$0xff] %v1462
        %1471 = vrot.lane.b32.xlu0 %v1207, 112
        %v1472 = vpop.permute.xlu0 %1471
        %1473 = vrot.lane.b32.xlu0 %v1209, 112
        %v1474 = vpop.permute.xlu0 %1473
        %1475 = vrot.lane.b32.xlu0 %v1211, 112
        %v1476 = vpop.permute.xlu0 %1475
        %1477 = vrot.lane.b32.xlu0 %v1213, 112
        %v1478 = vpop.permute.xlu0 %1477
        %1479 = vrot.lane.b32.xlu0 %v1208, 112
        %v1480 = vpop.permute.xlu0 %1479
        %1481 = vrot.lane.b32.xlu0 %v1210, 112
        %v1482 = vpop.permute.xlu0 %1481
        %1483 = vrot.lane.b32.xlu0 %v1212, 112
        %v1484 = vpop.permute.xlu0 %1483
        %1485 = vrot.lane.b32.xlu0 %v1214, 112
        %v1486 = vpop.permute.xlu0 %1485
        %v1487 = vsel %vm608, %v1472, %v1480
        %v1488 = vsel %vm608, %v1474, %v1482
        %v1489 = vsel %vm608, %v1476, %v1484
        %v1490 = vsel %vm608, %v1478, %v1486
        %v1491 = vsel %vm608, %v1480, %v1472
        %v1492 = vsel %vm608, %v1482, %v1474
        %v1493 = vsel %vm608, %v1484, %v1476
        %v1494 = vsel %vm608, %v1486, %v1478
        %v1495 = vmul.f32 %v1487, %v996
        %v1496 = vmul.f32 %v1491, %v1000
        %v1497 = vmul.f32 %v1488, %v996
        %v1498 = vmul.f32 %v1492, %v1000
        %v1499 = vmul.f32 %v1489, %v996
        %v1500 = vmul.f32 %v1493, %v1000
        %v1501 = vmul.f32 %v1490, %v996
        %v1502 = vmul.f32 %v1494, %v1000
        %1503 = vst [vmem:[#allocation4 + $0x1c0] sm:$0xff] %v1495
        %1504 = vst [vmem:[#allocation4 + $0x1c8] sm:$0xff] %v1496
        %1505 = vst [vmem:[#allocation4 + $0x1d0] sm:$0xff] %v1497
        %1506 = vst [vmem:[#allocation4 + $0x1d8] sm:$0xff] %v1498
        %1507 = vst [vmem:[#allocation4 + $0x1e0] sm:$0xff] %v1499
        %1508 = vst [vmem:[#allocation4 + $0x1e8] sm:$0xff] %v1500
        %1509 = vst [vmem:[#allocation4 + $0x1f0] sm:$0xff] %v1501
        %1510 = vst [vmem:[#allocation4 + $0x1f8] sm:$0xff] %v1502
        %1511 = vrot.lane.b32.xlu0 %v1207, 111
        %v1512 = vpop.permute.xlu0 %1511
        %1513 = vrot.lane.b32.xlu0 %v1209, 111
        %v1514 = vpop.permute.xlu0 %1513
        %1515 = vrot.lane.b32.xlu0 %v1211, 111
        %v1516 = vpop.permute.xlu0 %1515
        %1517 = vrot.lane.b32.xlu0 %v1213, 111
        %v1518 = vpop.permute.xlu0 %1517
        %1519 = vrot.lane.b32.xlu0 %v1208, 111
        %v1520 = vpop.permute.xlu0 %1519
        %1521 = vrot.lane.b32.xlu0 %v1210, 111
        %v1522 = vpop.permute.xlu0 %1521
        %1523 = vrot.lane.b32.xlu0 %v1212, 111
        %v1524 = vpop.permute.xlu0 %1523
        %1525 = vrot.lane.b32.xlu0 %v1214, 111
        %v1526 = vpop.permute.xlu0 %1525
        %v1527 = vsel %vm642, %v1512, %v1520
        %v1528 = vsel %vm642, %v1514, %v1522
        %v1529 = vsel %vm642, %v1516, %v1524
        %v1530 = vsel %vm642, %v1518, %v1526
        %v1531 = vsel %vm642, %v1520, %v1512
        %v1532 = vsel %vm642, %v1522, %v1514
        %v1533 = vsel %vm642, %v1524, %v1516
        %v1534 = vsel %vm642, %v1526, %v1518
        %v1535 = vmul.f32 %v1527, %v1024
        %v1536 = vmul.f32 %v1531, %v1028
        %v1537 = vmul.f32 %v1528, %v1024
        %v1538 = vmul.f32 %v1532, %v1028
        %v1539 = vmul.f32 %v1529, %v1024
        %v1540 = vmul.f32 %v1533, %v1028
        %v1541 = vmul.f32 %v1530, %v1024
        %v1542 = vmul.f32 %v1534, %v1028
        %1543 = vst [vmem:[#allocation4 + $0x200] sm:$0xff] %v1535
        %1544 = vst [vmem:[#allocation4 + $0x208] sm:$0xff] %v1536
        %1545 = vst [vmem:[#allocation4 + $0x210] sm:$0xff] %v1537
        %1546 = vst [vmem:[#allocation4 + $0x218] sm:$0xff] %v1538
        %1547 = vst [vmem:[#allocation4 + $0x220] sm:$0xff] %v1539
        %1548 = vst [vmem:[#allocation4 + $0x228] sm:$0xff] %v1540
        %1549 = vst [vmem:[#allocation4 + $0x230] sm:$0xff] %v1541
        %1550 = vst [vmem:[#allocation4 + $0x238] sm:$0xff] %v1542
        %v1551 = vld [vmem:[%s8] sm:$0x7]
        %v1552 = vld [vmem:[#allocation4] sm:$0xff]
        %v1553 = vld [vmem:[#allocation4 + $0x8] sm:$0xff]
        %v1554 = vld [vmem:[#allocation4 + $0x10] sm:$0xff]
        %v1555 = vld [vmem:[#allocation4 + $0x18] sm:$0xff]
        %v1556 = vld [vmem:[#allocation4 + $0x20] sm:$0xff]
        %v1557 = vld [vmem:[#allocation4 + $0x28] sm:$0xff]
        %v1558 = vld [vmem:[#allocation4 + $0x30] sm:$0xff]
        %v1559 = vld [vmem:[#allocation4 + $0x38] sm:$0xff]
        %v1560 = vld [vmem:[#allocation4 + $0x40] sm:$0xff]
        %v1561 = vld [vmem:[#allocation4 + $0x48] sm:$0xff]
        %v1562 = vld [vmem:[#allocation4 + $0x50] sm:$0xff]
        %v1563 = vld [vmem:[#allocation4 + $0x58] sm:$0xff]
        %v1564 = vld [vmem:[#allocation4 + $0x60] sm:$0xff]
        %v1565 = vld [vmem:[#allocation4 + $0x68] sm:$0xff]
        %v1566 = vld [vmem:[#allocation4 + $0x70] sm:$0xff]
        %v1567 = vld [vmem:[#allocation4 + $0x78] sm:$0xff]
        %v1568 = vld [vmem:[#allocation4 + $0x80] sm:$0xff]
        %v1569 = vld [vmem:[#allocation4 + $0x88] sm:$0xff]
        %v1570 = vld [vmem:[#allocation4 + $0x90] sm:$0xff]
        %v1571 = vld [vmem:[#allocation4 + $0x98] sm:$0xff]
        %v1572 = vld [vmem:[#allocation4 + $0xa0] sm:$0xff]
        %v1573 = vld [vmem:[#allocation4 + $0xa8] sm:$0xff]
        %v1574 = vld [vmem:[#allocation4 + $0xb0] sm:$0xff]
        %v1575 = vld [vmem:[#allocation4 + $0xb8] sm:$0xff]
        %v1576 = vld [vmem:[#allocation4 + $0xc0] sm:$0xff]
        %v1577 = vld [vmem:[#allocation4 + $0xc8] sm:$0xff]
        %v1578 = vld [vmem:[#allocation4 + $0xd0] sm:$0xff]
        %v1579 = vld [vmem:[#allocation4 + $0xd8] sm:$0xff]
        %v1580 = vld [vmem:[#allocation4 + $0xe0] sm:$0xff]
        %v1581 = vld [vmem:[#allocation4 + $0xe8] sm:$0xff]
        %v1582 = vld [vmem:[#allocation4 + $0xf0] sm:$0xff]
        %v1583 = vld [vmem:[#allocation4 + $0xf8] sm:$0xff]
        %v1584 = vld [vmem:[#allocation4 + $0x100] sm:$0xff]
        %v1585 = vld [vmem:[#allocation4 + $0x108] sm:$0xff]
        %v1586 = vld [vmem:[#allocation4 + $0x110] sm:$0xff]
        %v1587 = vld [vmem:[#allocation4 + $0x118] sm:$0xff]
        %v1588 = vld [vmem:[#allocation4 + $0x120] sm:$0xff]
        %v1589 = vld [vmem:[#allocation4 + $0x128] sm:$0xff]
        %v1590 = vld [vmem:[#allocation4 + $0x130] sm:$0xff]
        %v1591 = vld [vmem:[#allocation4 + $0x138] sm:$0xff]
        %v1592 = vld [vmem:[#allocation4 + $0x140] sm:$0xff]
        %v1593 = vld [vmem:[#allocation4 + $0x148] sm:$0xff]
        %v1594 = vld [vmem:[#allocation4 + $0x150] sm:$0xff]
        %v1595 = vld [vmem:[#allocation4 + $0x158] sm:$0xff]
        %v1596 = vld [vmem:[#allocation4 + $0x160] sm:$0xff]
        %v1597 = vld [vmem:[#allocation4 + $0x168] sm:$0xff]
        %v1598 = vld [vmem:[#allocation4 + $0x170] sm:$0xff]
        %v1599 = vld [vmem:[#allocation4 + $0x178] sm:$0xff]
        %v1600 = vld [vmem:[#allocation4 + $0x180] sm:$0xff]
        %v1601 = vld [vmem:[#allocation4 + $0x188] sm:$0xff]
        %v1602 = vld [vmem:[#allocation4 + $0x190] sm:$0xff]
        %v1603 = vld [vmem:[#allocation4 + $0x198] sm:$0xff]
        %v1604 = vld [vmem:[#allocation4 + $0x1a0] sm:$0xff]
        %v1605 = vld [vmem:[#allocation4 + $0x1a8] sm:$0xff]
        %v1606 = vld [vmem:[#allocation4 + $0x1b0] sm:$0xff]
        %v1607 = vld [vmem:[#allocation4 + $0x1b8] sm:$0xff]
        %v1608 = vld [vmem:[#allocation4 + $0x1c0] sm:$0xff]
        %v1609 = vld [vmem:[#allocation4 + $0x1c8] sm:$0xff]
        %v1610 = vld [vmem:[#allocation4 + $0x1d0] sm:$0xff]
        %v1611 = vld [vmem:[#allocation4 + $0x1d8] sm:$0xff]
        %v1612 = vld [vmem:[#allocation4 + $0x1e0] sm:$0xff]
        %v1613 = vld [vmem:[#allocation4 + $0x1e8] sm:$0xff]
        %v1614 = vld [vmem:[#allocation4 + $0x1f0] sm:$0xff]
        %v1615 = vld [vmem:[#allocation4 + $0x1f8] sm:$0xff]
        %v1616 = vld [vmem:[#allocation4 + $0x200] sm:$0xff]
        %v1617 = vld [vmem:[#allocation4 + $0x208] sm:$0xff]
        %v1618 = vld [vmem:[#allocation4 + $0x210] sm:$0xff]
        %v1619 = vld [vmem:[#allocation4 + $0x218] sm:$0xff]
        %v1620 = vld [vmem:[#allocation4 + $0x220] sm:$0xff]
        %v1621 = vld [vmem:[#allocation4 + $0x228] sm:$0xff]
        %v1622 = vld [vmem:[#allocation4 + $0x230] sm:$0xff]
        %v1623 = vld [vmem:[#allocation4 + $0x238] sm:$0xff]
        %s1624 = sld [smem:[#allocation5]]
        %v1625 = vstv %s1624
        %v1627 = vlaneseq
        %v1628 = vshrl.u32 %v1627, 7
        %v1629 = vsub.s32 0, %v1628
        %v1630 = vrot.slane %v1551, %v1629
        %v1631 = vlaneseq
        %v1632 = vshrl.u32 %v1631, 7
        %v1633 = vsub.s32 1, %v1632
        %v1634 = vrot.slane %v1551, %v1633
        %v1635 = vlaneseq
        %v1636 = vshrl.u32 %v1635, 7
        %v1637 = vsub.s32 2, %v1636
        %v1638 = vrot.slane %v1551, %v1637
        %vm1641 = vcmask 261120
        %v1642 = vsel %vm1641, %v1638, 0
        %1644 = vmatprep.subr.mxu0 %v1583
        %1645 = vmatpush1.msra.mxu0 %v1582
        %1646 = vmatprep.subr.mxu0 %v1581
        %1647 = vmatpush1.msra.mxu0 %v1580
        %1648 = vmatprep.subr.mxu0 %v1579
        %1649 = vmatpush1.msra.mxu0 %v1578
        %1650 = vmatprep.subr.mxu0 %v1577
        %1651 = vmatpush1.msra.mxu0 %v1576
        %1652 = vmatprep.subr.mxu0 %v1575
        %1653 = vmatpush1.msra.mxu0 %v1574
        %1654 = vmatprep.subr.mxu0 %v1573
        %1655 = vmatpush1.msra.mxu0 %v1572
        %1656 = vmatprep.subr.mxu0 %v1571
        %1657 = vmatpush1.msra.mxu0 %v1570
        %1658 = vmatprep.subr.mxu0 %v1569
        %1659 = vmatpush1.msra.mxu0 %v1568
        %1660 = vmatprep.subr.mxu0 %v1567
        %1661 = vmatpush1.msra.mxu0 %v1566
        %1662 = vmatprep.subr.mxu0 %v1565
        %1663 = vmatpush1.msra.mxu0 %v1564
        %1664 = vmatprep.subr.mxu0 %v1563
        %1665 = vmatpush1.msra.mxu0 %v1562
        %1666 = vmatprep.subr.mxu0 %v1561
        %1667 = vmatpush1.msra.mxu0 %v1560
        %1668 = vmatprep.subr.mxu0 %v1559
        %1669 = vmatpush1.msra.mxu0 %v1558
        %1670 = vmatprep.subr.mxu0 %v1557
        %1671 = vmatpush1.msra.mxu0 %v1556
        %1672 = vmatprep.subr.mxu0 %v1555
        %1673 = vmatpush1.msra.mxu0 %v1554
        %1674 = vmatprep.subr.mxu0 %v1553
        %1675 = vmatpush1.msra.mxu0 %v1552
        %1676 = vmatprep.subr.mxu0 %v1615
        %1677 = vmatpush2.msra.mxu0 %v1614
        %1678 = vmatprep.subr.mxu0 %v1613
        %1679 = vmatpush2.msra.mxu0 %v1612
        %1680 = vmatprep.subr.mxu0 %v1611
        %1681 = vmatpush2.msra.mxu0 %v1610
        %1682 = vmatprep.subr.mxu0 %v1609
        %1683 = vmatpush2.msra.mxu0 %v1608
        %1684 = vmatprep.subr.mxu0 %v1607
        %1685 = vmatpush2.msra.mxu0 %v1606
        %1686 = vmatprep.subr.mxu0 %v1605
        %1687 = vmatpush2.msra.mxu0 %v1604
        %1688 = vmatprep.subr.mxu0 %v1603
        %1689 = vmatpush2.msra.mxu0 %v1602
        %1690 = vmatprep.subr.mxu0 %v1601
        %1691 = vmatpush2.msra.mxu0 %v1600
        %1692 = vmatprep.subr.mxu0 %v1599
        %1693 = vmatpush2.msra.mxu0 %v1598
        %1694 = vmatprep.subr.mxu0 %v1597
        %1695 = vmatpush2.msra.mxu0 %v1596
        %1696 = vmatprep.subr.mxu0 %v1595
        %1697 = vmatpush2.msra.mxu0 %v1594
        %1698 = vmatprep.subr.mxu0 %v1593
        %1699 = vmatpush2.msra.mxu0 %v1592
        %1700 = vmatprep.subr.mxu0 %v1591
        %1701 = vmatpush2.msra.mxu0 %v1590
        %1702 = vmatprep.subr.mxu0 %v1589
        %1703 = vmatpush2.msra.mxu0 %v1588
        %1704 = vmatprep.subr.mxu0 %v1587
        %1705 = vmatpush2.msra.mxu0 %v1586
        %1706 = vmatprep.subr.mxu0 %v1585
        %1707 = vmatpush2.msra.mxu0 %v1584
        %1708 = vmatprep.mubr.f32.mxu0 %v1634
        %1709 = vmatmul.mubr.f32.gmra.mxu0 %v1630
        %v1710 = vpop.f32.mrf.mxu0
        %v1711 = vadd.f32 %v1625, %v1710
        %v1712 = vpop.f32.mrf.mxu0
        %v1713 = vadd.f32 %v1625, %v1712
        %1714 = vdwg.mxu0
        %1715 = vmatprep.subr.mxu0 0.0
        %1716 = vmatpush1.msra.mxu0 0.0
        %1717 = vmatprep.subr.mxu0 0.0
        %1718 = vmatpush1.msra.mxu0 0.0
        %1719 = vmatprep.subr.mxu0 0.0
        %1720 = vmatpush1.msra.mxu0 0.0
        %1721 = vmatprep.subr.mxu0 0.0
        %1722 = vmatpush1.msra.mxu0 0.0
        %1723 = vmatprep.subr.mxu0 0.0
        %1724 = vmatpush1.msra.mxu0 0.0
        %1725 = vmatprep.subr.mxu0 0.0
        %1726 = vmatpush1.msra.mxu0 0.0
        %1727 = vmatprep.subr.mxu0 0.0
        %1728 = vmatpush1.msra.mxu0 0.0
        %1729 = vmatprep.subr.mxu0 0.0
        %1730 = vmatpush1.msra.mxu0 0.0
        %1731 = vmatprep.subr.mxu0 0.0
        %1732 = vmatpush1.msra.mxu0 0.0
        %1733 = vmatprep.subr.mxu0 0.0
        %1734 = vmatpush1.msra.mxu0 0.0
        %1735 = vmatprep.subr.mxu0 0.0
        %1736 = vmatpush1.msra.mxu0 0.0
        %1737 = vmatprep.subr.mxu0 0.0
        %1738 = vmatpush1.msra.mxu0 0.0
        %1739 = vmatprep.subr.mxu0 %v1623
        %1740 = vmatpush1.msra.mxu0 %v1622
        %1741 = vmatprep.subr.mxu0 %v1621
        %1742 = vmatpush1.msra.mxu0 %v1620
        %1743 = vmatprep.subr.mxu0 %v1619
        %1744 = vmatpush1.msra.mxu0 %v1618
        %1745 = vmatprep.subr.mxu0 %v1617
        %1746 = vmatpush1.msra.mxu0 %v1616
        %1747 = vmatprep.subr.mxu0 0.0
        %1748 = vmatpush2.msra.mxu0 0.0
        %1749 = vmatprep.subr.mxu0 0.0
        %1750 = vmatpush2.msra.mxu0 0.0
        %1751 = vmatprep.subr.mxu0 0.0
        %1752 = vmatpush2.msra.mxu0 0.0
        %1753 = vmatprep.subr.mxu0 0.0
        %1754 = vmatpush2.msra.mxu0 0.0
        %1755 = vmatprep.subr.mxu0 0.0
        %1756 = vmatpush2.msra.mxu0 0.0
        %1757 = vmatprep.subr.mxu0 0.0
        %1758 = vmatpush2.msra.mxu0 0.0
        %1759 = vmatprep.subr.mxu0 0.0
        %1760 = vmatpush2.msra.mxu0 0.0
        %1761 = vmatprep.subr.mxu0 0.0
        %1762 = vmatpush2.msra.mxu0 0.0
        %1763 = vmatprep.subr.mxu0 0.0
        %1764 = vmatpush2.msra.mxu0 0.0
        %1765 = vmatprep.subr.mxu0 0.0
        %1766 = vmatpush2.msra.mxu0 0.0
        %1767 = vmatprep.subr.mxu0 0.0
        %1768 = vmatpush2.msra.mxu0 0.0
        %1769 = vmatprep.subr.mxu0 0.0
        %1770 = vmatpush2.msra.mxu0 0.0
        %1771 = vmatprep.subr.mxu0 0.0
        %1772 = vmatpush2.msra.mxu0 0.0
        %1773 = vmatprep.subr.mxu0 0.0
        %1774 = vmatpush2.msra.mxu0 0.0
        %1775 = vmatprep.subr.mxu0 0.0
        %1776 = vmatpush2.msra.mxu0 0.0
        %1777 = vmatprep.subr.mxu0 0.0
        %1778 = vmatpush2.msra.mxu0 0.0
        %1779 = vmatprep.mubr.f32.mxu0 0.0
        %1780 = vmatmul.mubr.f32.gmra.mxu0 %v1642
        %v1781 = vpop.f32.mrf.mxu0
        %v1782 = vadd.f32 %v1711, %v1781
        %v1783 = vpop.f32.mrf.mxu0
        %v1784 = vadd.f32 %v1713, %v1783
        %1785 = vdwg.mxu0
        %v1786 = vmax.f32 %v1782, 0.0
        %v1787 = vmax.f32 %v1784, 0.0
        %v1790 = vcombine.low %v1786, %v1787
        %v1792 = vunpack.c.l.s4 1966171168
        %v1793 = vunpack.c.0.s8 %v1792
        %v1794 = vlaneseq
        %v1795 = vshrl.u32 %v1794, 7
        %v1796 = vsub.s32 %v1793, %v1795
        %v1797 = vrot.slane %v1790, %v1796
        %v1799 = vunpack.c.l.s4 1966171168
        %v1800 = vunpack.c.0.s8 %v1799
        %v1801 = vlaneseq
        %v1802 = vshrl.u32 %v1801, 7
        %v1803 = vsub.s32 %v1800, %v1802
        %v1804 = vrot.slane %v1797, %v1803
        %v1806 = vsub.f32 %v361, %v1804
        %1807 = vst.msk [vmem:[%s360] sm:$0x3] %vm409, %v1806
        %p1808 = scmp.lt.s32.totalorder %s22, 1
        %s1809 = scalar_select %p1808, %s22, 1
        %s1810 = smul.addr %s1809, 2
        %s1811 = scalar_lea.vmem %s9, %s1810
        // Predicated region
        $region61: #{convnet_forward.1} parent=55 // pred_check
          %p1812 = pneg %p239
        $region62: #{convnet_forward.1} parent=55 // pred_check_branch
          %1814 = sbr.rel (%p1812) target = $region64
        $region63: #{convnet_forward.1} parent=55 // pred_region
          _
        $region64: #{convnet_forward.1} parent=55 // pred_fallthru
          _
      $region56: #{convnet_forward.1} parent=5 // pred_fallthru
        _
      %p1815 = scmp.le.s32.totalorder 2, %s17
      // Predicated region
      $region65: #{convnet_forward.1} parent=5 // pred_check
        %p1816 = pneg %p1815
      $region66: #{convnet_forward.1} parent=5 // pred_check_branch
        %1818 = sbr.rel (%p1816) target = $region68
      $region67: #{convnet_forward.1} parent=5 // pred_region
        %s1819 = ssub.s32 %s17, 2
        // Predicated region
        $region69: #{convnet_forward.1} parent=67 // pred_check
          %p1820 = pneg %p245
        $region70: #{convnet_forward.1} parent=67 // pred_check_branch
          %1822 = sbr.rel (%p1820) target = $region72
        $region71: #{convnet_forward.1} parent=67 // pred_region
          %p1823 = scmp.lt.s32.totalorder %s23, 1
          %s1824 = scalar_select %p1823, %s23, 1
          %s1825 = smul.addr %s1824, 2
          %s1826 = scalar_lea.vmem %s9, %s1825
        $region72: #{convnet_forward.1} parent=67 // pred_fallthru
          _
      $region68: #{convnet_forward.1} parent=5 // pred_fallthru
        _
    $region6: #{convnet_forward.1} parent=1 // loop_footer
      %s21 = sadd.s32 1, %s17
    $region7: #{convnet_forward.1} parent=1 // loop_footer_branch
      %16 = sbr.rel target = $region3
    $region8: #{convnet_forward.1} parent=1 // loop_exit
      _
    %1827 = vsyncpa [#allocation7], 1
    %s1828 = scalar_lea.sflag [#allocation7], 1
    %1829 = vsyncpa %s1828, 1

</llo_original>
